<compile_context>
chip_gen: v6e
topology: v6e:2x2x1
jax: 0.10.0
libtpu: 0.0.40
codegen_flags: <defaults>
</compile_context>

<pallas_src>
import functools

import numpy as np
import jax
import jax.numpy as jnp
from jax import lax
from jax.experimental import pallas as pl
from jax.experimental.pallas import tpu as pltpu


def _dw_boundary_masks(H, W):
    """(4, H*W) f32 validity masks: [h-1>=0, h+1<H, w-1>=0, w+1<W] per pixel."""
    p = np.arange(H * W)
    h, w = p // W, p % W
    m = np.stack([h >= 1, h <= H - 2, w >= 1, w <= W - 2]).astype(np.float32)
    return jnp.asarray(m)


def _nafblock_kernel(x_ref, red_ref, masks_ref, wmat_ref, wdw_ref, cvec_ref,
                     o_ref, *, H, W, Cp, eps):
    HW = H * W
    Dp = 2 * Cp
    inp = x_ref[0]                                   # (Cp, HW), lane-dense
    red = red_ref[...]                               # (1, Cp): 1/C on valid ch.

    # Boundary masks (1, HW) for the 3x3 depthwise conv (center needs none).
    m_top = masks_ref[0:1, :]      # (h-1) in range
    m_bot = masks_ref[1:2, :]      # (h+1) in range
    m_left = masks_ref[2:3, :]     # (w-1) in range
    m_right = masks_ref[3:4, :]    # (w+1) in range

    # Packed 1x1-conv weights (static, Cp-aligned sublane slices).
    w1 = wmat_ref[0:Dp, :]                              # conv1 fused (Dp, Cp)
    wsca = wmat_ref[Dp:Dp + Cp, :]                      # SCA         (Cp, Cp)
    w3 = wmat_ref[Dp + Cp:Dp + 2 * Cp, :]               # conv3       (Cp, Cp)
    w4 = wmat_ref[Dp + 2 * Cp:2 * Dp + 2 * Cp, :]       # conv4 fused (Dp, Cp)
    w5 = wmat_ref[2 * Dp + 2 * Cp:2 * Dp + 3 * Cp, :]   # conv5       (Cp, Cp)

    # Packed per-channel column vectors.
    g1 = cvec_ref[0 * Cp:1 * Cp, :]
    be1 = cvec_ref[1 * Cp:2 * Cp, :]
    b1 = cvec_ref[2 * Cp:4 * Cp, :]
    b2 = cvec_ref[4 * Cp:6 * Cp, :]
    bsca = cvec_ref[6 * Cp:7 * Cp, :]
    b3 = cvec_ref[7 * Cp:8 * Cp, :]
    beta = cvec_ref[8 * Cp:9 * Cp, :]
    g2 = cvec_ref[9 * Cp:10 * Cp, :]
    be2 = cvec_ref[10 * Cp:11 * Cp, :]
    b4 = cvec_ref[11 * Cp:13 * Cp, :]
    b5 = cvec_ref[13 * Cp:14 * Cp, :]
    gamma = cvec_ref[14 * Cp:15 * Cp, :]

    def layernorm(t):
        # Per-pixel LayerNorm over channels; sublane reductions go to the MXU.
        mu = jnp.dot(red, t, preferred_element_type=jnp.float32)        # (1, HW)
        ex2 = jnp.dot(red, t * t, preferred_element_type=jnp.float32)   # (1, HW)
        var = jnp.maximum(ex2 - mu * mu, 0.0)
        return (t - mu) * lax.rsqrt(var + eps)

    def pconv(w, t, b):
        # 1x1 conv as (rows, Cp) @ (Cp, HW) MXU matmul, lane-dense output.
        return jnp.dot(w, t, preferred_element_type=jnp.float32) + b

    def dwconv3x3(t, b):
        # 3x3 depthwise conv (padding=1) on the fused (Dp, HW) tensor.
        # tap(dh,dw)[p] = t[p + dh*W + dw] masked; composed rolls: 2 row rolls
        # (+-W) then +-1 lane rolls of those, 8 XLU rolls total.
        r_top = pltpu.roll(t, W, axis=1) * m_top           # t[p - W], dh = -1
        r_bot = pltpu.roll(t, HW - W, axis=1) * m_bot      # t[p + W], dh = +1
        acc = wdw_ref[4] * t + wdw_ref[1] * r_top + wdw_ref[7] * r_bot
        for i, r in enumerate((r_top, t, r_bot)):          # dh = i - 1
            left = pltpu.roll(r, 1, axis=1) * m_left           # dw = -1
            right = pltpu.roll(r, HW - 1, axis=1) * m_right    # dw = +1
            acc = acc + wdw_ref[3 * i] * left + wdw_ref[3 * i + 2] * right
        return acc + b

    # ---- branch 1: norm1 -> conv1 -> dwconv2 -> SimpleGate -> SCA -> conv3
    t = g1 * layernorm(inp) + be1
    t = pconv(w1, t, b1)                                   # (Dp, HW)
    t = dwconv3x3(t, b2)
    t = t[:Cp, :] * t[Cp:, :]                              # SimpleGate (Cp, HW)
    pooled = jnp.mean(t, axis=1, keepdims=True)            # (Cp, 1) global pool
    att = jnp.dot(wsca, pooled, preferred_element_type=jnp.float32) + bsca
    t = t * att                                            # SCA
    t = pconv(w3, t, b3)
    # dropout1 is nn.Identity (drop_out_rate == 0.0)
    y = inp + t * beta

    # ---- branch 2: norm2 -> conv4 -> SimpleGate -> conv5
    t = g2 * layernorm(y) + be2
    t = pconv(w4, t, b4)                                   # (Dp, HW)
    t = t[:Cp, :] * t[Cp:, :]                              # SimpleGate
    t = pconv(w5, t, b5)
    # dropout2 is nn.Identity
    o_ref[0] = (y + t * gamma).astype(o_ref.dtype)


def _const_index_map(ndim):
    zeros = (0,) * ndim
    return lambda b: zeros


def _vmem_limit_bytes():
    try:
        cap = int(pltpu.get_tpu_info().vmem_capacity_bytes)
    except Exception:
        cap = 64 * 1024 * 1024
    return int(min(100 * 1024 * 1024, max(32 * 1024 * 1024, (cap * 9) // 10)))


def nafblock_forward(x, p, *, eps=1e-6):
    """NAFBlock forward. x: (B, C, H, W) float32; p: dict of parameters."""
    B, C, H, W = x.shape
    HW = H * W
    assert HW % 128 == 0, "H*W must be a multiple of 128 (lane-dense layout)"
    assert p["conv1_w"].shape[0] == 2 * C
    # TODO(synk): for large images, tile H*W spatially (1-row halo for the 3x3
    # depthwise conv + two-pass SCA pooling) instead of one slab per batch.
    # TODO(synk): optional bf16 activations on v6e/v7x (keep LN stats, matmul
    # accumulation and residual adds in f32).

    f32 = jnp.float32
    Cp = ((C + 7) // 8) * 8            # pad channels to a sublane multiple
    Dp = 2 * Cp

    def colc(v):                        # (C,)  -> (Cp, 1)
        return jnp.pad(v.reshape(C, 1).astype(f32), ((0, Cp - C), (0, 0)))

    def col2c(v):                       # (2C,) -> (Dp, 1), halves at 0 / Cp
        return jnp.concatenate([colc(v[:C]), colc(v[C:])], axis=0)

    def padcc(w):                       # (C, C)  -> (Cp, Cp)
        return jnp.pad(w.astype(f32), ((0, Cp - C), (0, Cp - C)))

    def pad2cc(w):                      # (2C, C) -> (Dp, Cp), halves at 0 / Cp
        w = jnp.pad(w.astype(f32), ((0, 0), (0, Cp - C)))
        return jnp.concatenate(
            [jnp.pad(w[:C], ((0, Cp - C), (0, 0))),
             jnp.pad(w[C:], ((0, Cp - C), (0, 0)))], axis=0)

    # LayerNorm channel-reduction row: 1/C on valid channels, 0 on padding.
    red = jnp.zeros((1, Cp), f32).at[0, :C].set(1.0 / C)

    masks = _dw_boundary_masks(H, W)                        # (4, HW)

    # Five 1x1-conv weights packed into one (7*Cp, Cp) slab.
    wmat = jnp.concatenate([
        pad2cc(p["conv1_w"]),            # [0 : Dp]
        padcc(p["sca_w"]),               # [Dp : Dp+Cp]
        padcc(p["conv3_w"]),             # [Dp+Cp : Dp+2Cp]
        pad2cc(p["conv4_w"]),            # [Dp+2Cp : 2Dp+2Cp]
        padcc(p["conv5_w"]),             # [2Dp+2Cp : 2Dp+3Cp]
    ], axis=0)

    # Depthwise 3x3 weights: (2C,3,3) -> (9, Dp, 1), tap k = (dh+1)*3+(dw+1).
    w2 = p["conv2_w"].reshape(2 * C, 9).astype(f32)
    w2 = jnp.concatenate([jnp.pad(w2[:C], ((0, Cp - C), (0, 0))),
                          jnp.pad(w2[C:], ((0, Cp - C), (0, 0)))], axis=0)
    wdw = jnp.transpose(w2).reshape(9, Dp, 1)

    # All per-channel column vectors packed into one (15*Cp, 1) slab.
    cvec = jnp.concatenate([
        colc(p["ln1_w"]), colc(p["ln1_b"]),
        col2c(p["conv1_b"]), col2c(p["conv2_b"]),
        colc(p["sca_b"]), colc(p["conv3_b"]), colc(p["beta"]),
        colc(p["ln2_w"]), colc(p["ln2_b"]),
        col2c(p["conv4_b"]), colc(p["conv5_b"]), colc(p["gamma"]),
    ], axis=0)

    const_args = [red, masks, wmat, wdw, cvec]
    in_specs = (
        [pl.BlockSpec((1, Cp, HW), lambda b: (b, 0, 0))]
        + [pl.BlockSpec(a.shape, _const_index_map(a.ndim)) for a in const_args]
    )

    flops_px = (2 * 2 * C * C          # conv1
                + 2 * 9 * 2 * C        # conv2 (depthwise)
                + 2 * C * C            # conv3
                + 2 * 2 * C * C        # conv4
                + 2 * C * C            # conv5
                + 2 * 4 * C            # LN reductions on MXU
                + 16 * C)              # gates / residuals / masks (approx)
    n_param = int(sum(int(np.prod(a.shape)) for a in const_args))
    cost = pl.CostEstimate(
        flops=int(B * HW * flops_px),
        transcendentals=int(2 * B * HW),
        bytes_accessed=int(4 * (2 * B * Cp * HW + n_param)),
    )

    xp = jnp.pad(x.reshape(B, C, HW).astype(f32),
                 ((0, 0), (0, Cp - C), (0, 0)))

    kernel = functools.partial(_nafblock_kernel, H=H, W=W, Cp=Cp, eps=float(eps))
    out = pl.pallas_call(
        kernel,
        out_shape=jax.ShapeDtypeStruct((B, Cp, HW), x.dtype),
        grid_spec=pltpu.PrefetchScalarGridSpec(
            num_scalar_prefetch=0,
            grid=(B,),
            in_specs=in_specs,
            out_specs=pl.BlockSpec((1, Cp, HW), lambda b: (b, 0, 0)),
        ),
        compiler_params=pltpu.CompilerParams(
            dimension_semantics=("parallel",),
            vmem_limit_bytes=_vmem_limit_bytes(),
        ),
        cost_estimate=cost,
    )(xp, *const_args)
    return out[:, :C, :].reshape(B, C, H, W)


def nafblock_ref(x, p, eps=1e-6):
    """Pure-JAX (XLA) reference of the PyTorch NAFBlock forward."""
    hp = lax.Precision.HIGHEST

    def ln(t, w, b):
        mu = t.mean(axis=1, keepdims=True)
        var = ((t - mu) ** 2).mean(axis=1, keepdims=True)
        y = (t - mu) / jnp.sqrt(var + eps)
        return w[None, :, None, None] * y + b[None, :, None, None]

    def pconv(t, w, b):
        return (jnp.einsum("oi,bihw->bohw", w, t, precision=hp)
                + b[None, :, None, None])

    def dwconv(t, w, b):
        o = lax.conv_general_dilated(
            t, w[:, None, :, :], (1, 1), ((1, 1), (1, 1)),
            dimension_numbers=("NCHW", "OIHW", "NCHW"),
            feature_group_count=t.shape[1], precision=hp)
        return o + b[None, :, None, None]

    inp = x
    t = ln(inp, p["ln1_w"], p["ln1_b"])
    t = pconv(t, p["conv1_w"], p["conv1_b"])
    t = dwconv(t, p["conv2_w"], p["conv2_b"])
    t1, t2 = jnp.split(t, 2, axis=1)
    t = t1 * t2
    pooled = t.mean(axis=(2, 3), keepdims=True)
    att = (jnp.einsum("oi,bikl->bokl", p["sca_w"], pooled, precision=hp)
           + p["sca_b"][None, :, None, None])
    t = t * att
    t = pconv(t, p["conv3_w"], p["conv3_b"])
    y = inp + t * p["beta"][None, :, None, None]
    t = ln(y, p["ln2_w"], p["ln2_b"])
    t = pconv(t, p["conv4_w"], p["conv4_b"])
    t1, t2 = jnp.split(t, 2, axis=1)
    t = t1 * t2
    t = pconv(t, p["conv5_w"], p["conv5_b"])
    return y + t * p["gamma"][None, :, None, None]


if __name__ == "__main__":
    key = jax.random.PRNGKey(0)
    ks = jax.random.split(key, 19)
    B, C, H, W = 2, 4, 16, 16
    dwc = 2 * C

    def rnd(k, shape, s):
        return jax.random.normal(k, shape, dtype=jnp.float32) * s

    x = jax.random.normal(ks[0], (B, C, H, W), dtype=jnp.float32)
    params = {
        "ln1_w": 1.0 + rnd(ks[1], (C,), 0.1), "ln1_b": rnd(ks[2], (C,), 0.1),
        "conv1_w": rnd(ks[3], (dwc, C), 0.3), "conv1_b": rnd(ks[4], (dwc,), 0.1),
        "conv2_w": rnd(ks[5], (dwc, 3, 3), 0.3), "conv2_b": rnd(ks[6], (dwc,), 0.1),
        "sca_w": rnd(ks[7], (C, C), 0.3), "sca_b": rnd(ks[8], (C,), 0.1),
        "conv3_w": rnd(ks[9], (C, C), 0.3), "conv3_b": rnd(ks[10], (C,), 0.1),
        "conv4_w": rnd(ks[11], (dwc, C), 0.3), "conv4_b": rnd(ks[12], (dwc,), 0.1),
        "conv5_w": rnd(ks[13], (C, C), 0.3), "conv5_b": rnd(ks[14], (C,), 0.1),
        "ln2_w": 1.0 + rnd(ks[15], (C,), 0.1), "ln2_b": rnd(ks[16], (C,), 0.1),
        # beta/gamma are zero-initialized in the PyTorch module; use nonzero
        # example values so the test exercises both residual branches.
        "beta": rnd(ks[17], (C,), 0.5), "gamma": rnd(ks[18], (C,), 0.5),
    }

    out = jax.block_until_ready(nafblock_forward(x, params))
    ref = jax.block_until_ready(nafblock_ref(x, params))

    assert out.shape == x.shape
    max_err = float(jnp.max(jnp.abs(out - ref)))
    assert jnp.allclose(out, ref, atol=1e-3, rtol=1e-3), f"max abs err={max_err}"
    print("KERNEL_OK")
</pallas_src>

<mosaic_0001>
module attributes {stable_mosaic.version = 11 : i64} {
  func.func @_nafblock_kernel(%arg0: i32, %arg1: memref<1x8x256xf32, #tpu.memory_space<vmem>>, %arg2: memref<1x8xf32, #tpu.memory_space<vmem>>, %arg3: memref<4x256xf32, #tpu.memory_space<vmem>>, %arg4: memref<56x8xf32, #tpu.memory_space<vmem>>, %arg5: memref<9x16x1xf32, #tpu.memory_space<vmem>>, %arg6: memref<120x1xf32, #tpu.memory_space<vmem>>, %arg7: memref<1x8x256xf32, #tpu.memory_space<vmem>>) attributes {dimension_semantics = [#tpu.dimension_semantics<parallel>], iteration_bounds = array<i64: 2>, scalar_prefetch = 0 : i64, scratch_operands = 0 : i64, tpu.core_type = #tpu.core_type<tc>, window_params = [{transform_indices = @transform_0, window_bounds = array<i64: 1, 8, 256>}, {pipeline_mode = #tpu.pipeline_mode<synchronous>, transform_indices = @transform_1, window_bounds = array<i64: 1, 8>}, {pipeline_mode = #tpu.pipeline_mode<synchronous>, transform_indices = @transform_2, window_bounds = array<i64: 4, 256>}, {pipeline_mode = #tpu.pipeline_mode<synchronous>, transform_indices = @transform_3, window_bounds = array<i64: 56, 8>}, {pipeline_mode = #tpu.pipeline_mode<synchronous>, transform_indices = @transform_4, window_bounds = array<i64: 9, 16, 1>}, {pipeline_mode = #tpu.pipeline_mode<synchronous>, transform_indices = @transform_5, window_bounds = array<i64: 120, 1>}, {transform_indices = @transform_6, window_bounds = array<i64: 1, 8, 256>}]} {
    %c0 = arith.constant 0 : index
    %c0_0 = arith.constant 0 : index
    %c0_1 = arith.constant 0 : index
    %0 = vector.load %arg1[%c0, %c0_0, %c0_1] : memref<1x8x256xf32, #tpu.memory_space<vmem>>, vector<1x8x256xf32>
    %1 = vector.shape_cast %0 : vector<1x8x256xf32> to vector<8x256xf32>
    %c0_2 = arith.constant 0 : index
    %c0_3 = arith.constant 0 : index
    %2 = vector.load %arg2[%c0_2, %c0_3] : memref<1x8xf32, #tpu.memory_space<vmem>>, vector<1x8xf32>
    %c0_4 = arith.constant 0 : index
    %c0_5 = arith.constant 0 : index
    %3 = vector.load %arg3[%c0_4, %c0_5] : memref<4x256xf32, #tpu.memory_space<vmem>>, vector<1x256xf32>
    %c1 = arith.constant 1 : index
    %c0_6 = arith.constant 0 : index
    %4 = vector.load %arg3[%c1, %c0_6] : memref<4x256xf32, #tpu.memory_space<vmem>>, vector<1x256xf32>
    %c2 = arith.constant 2 : index
    %c0_7 = arith.constant 0 : index
    %5 = vector.load %arg3[%c2, %c0_7] : memref<4x256xf32, #tpu.memory_space<vmem>>, vector<1x256xf32>
    %c3 = arith.constant 3 : index
    %c0_8 = arith.constant 0 : index
    %6 = vector.load %arg3[%c3, %c0_8] : memref<4x256xf32, #tpu.memory_space<vmem>>, vector<1x256xf32>
    %c0_9 = arith.constant 0 : index
    %c0_10 = arith.constant 0 : index
    %7 = vector.load %arg4[%c0_9, %c0_10] : memref<56x8xf32, #tpu.memory_space<vmem>>, vector<16x8xf32>
    %c16 = arith.constant 16 : index
    %c0_11 = arith.constant 0 : index
    %8 = vector.load %arg4[%c16, %c0_11] : memref<56x8xf32, #tpu.memory_space<vmem>>, vector<8x8xf32>
    %c24 = arith.constant 24 : index
    %c0_12 = arith.constant 0 : index
    %9 = vector.load %arg4[%c24, %c0_12] : memref<56x8xf32, #tpu.memory_space<vmem>>, vector<8x8xf32>
    %c32 = arith.constant 32 : index
    %c0_13 = arith.constant 0 : index
    %10 = vector.load %arg4[%c32, %c0_13] : memref<56x8xf32, #tpu.memory_space<vmem>>, vector<16x8xf32>
    %c48 = arith.constant 48 : index
    %c0_14 = arith.constant 0 : index
    %11 = vector.load %arg4[%c48, %c0_14] : memref<56x8xf32, #tpu.memory_space<vmem>>, vector<8x8xf32>
    %c0_15 = arith.constant 0 : index
    %c0_16 = arith.constant 0 : index
    %12 = vector.load %arg6[%c0_15, %c0_16] : memref<120x1xf32, #tpu.memory_space<vmem>>, vector<8x1xf32>
    %c8 = arith.constant 8 : index
    %c0_17 = arith.constant 0 : index
    %13 = vector.load %arg6[%c8, %c0_17] : memref<120x1xf32, #tpu.memory_space<vmem>>, vector<8x1xf32>
    %c16_18 = arith.constant 16 : index
    %c0_19 = arith.constant 0 : index
    %14 = vector.load %arg6[%c16_18, %c0_19] : memref<120x1xf32, #tpu.memory_space<vmem>>, vector<16x1xf32>
    %c32_20 = arith.constant 32 : index
    %c0_21 = arith.constant 0 : index
    %15 = vector.load %arg6[%c32_20, %c0_21] : memref<120x1xf32, #tpu.memory_space<vmem>>, vector<16x1xf32>
    %c48_22 = arith.constant 48 : index
    %c0_23 = arith.constant 0 : index
    %16 = vector.load %arg6[%c48_22, %c0_23] : memref<120x1xf32, #tpu.memory_space<vmem>>, vector<8x1xf32>
    %c56 = arith.constant 56 : index
    %c0_24 = arith.constant 0 : index
    %17 = vector.load %arg6[%c56, %c0_24] : memref<120x1xf32, #tpu.memory_space<vmem>>, vector<8x1xf32>
    %c64 = arith.constant 64 : index
    %c0_25 = arith.constant 0 : index
    %18 = vector.load %arg6[%c64, %c0_25] : memref<120x1xf32, #tpu.memory_space<vmem>>, vector<8x1xf32>
    %c72 = arith.constant 72 : index
    %c0_26 = arith.constant 0 : index
    %19 = vector.load %arg6[%c72, %c0_26] : memref<120x1xf32, #tpu.memory_space<vmem>>, vector<8x1xf32>
    %c80 = arith.constant 80 : index
    %c0_27 = arith.constant 0 : index
    %20 = vector.load %arg6[%c80, %c0_27] : memref<120x1xf32, #tpu.memory_space<vmem>>, vector<8x1xf32>
    %c88 = arith.constant 88 : index
    %c0_28 = arith.constant 0 : index
    %21 = vector.load %arg6[%c88, %c0_28] : memref<120x1xf32, #tpu.memory_space<vmem>>, vector<16x1xf32>
    %c104 = arith.constant 104 : index
    %c0_29 = arith.constant 0 : index
    %22 = vector.load %arg6[%c104, %c0_29] : memref<120x1xf32, #tpu.memory_space<vmem>>, vector<8x1xf32>
    %c112 = arith.constant 112 : index
    %c0_30 = arith.constant 0 : index
    %23 = vector.load %arg6[%c112, %c0_30] : memref<120x1xf32, #tpu.memory_space<vmem>>, vector<8x1xf32>
    %cst = arith.constant dense<0.000000e+00> : vector<1x256xf32>
    %24 = tpu.matmul %2, %1, %cst {dimension_numbers = #tpu.dot_dimension_numbers<[1], [0], [0], [1], [0, 0, 1, 1], [], []>} : vector<1x8xf32>, vector<8x256xf32>, vector<1x256xf32> -> vector<1x256xf32>
    %25 = arith.mulf %1, %1 : vector<8x256xf32>
    %cst_31 = arith.constant dense<0.000000e+00> : vector<1x256xf32>
    %26 = tpu.matmul %2, %25, %cst_31 {dimension_numbers = #tpu.dot_dimension_numbers<[1], [0], [0], [1], [0, 0, 1, 1], [], []>} : vector<1x8xf32>, vector<8x256xf32>, vector<1x256xf32> -> vector<1x256xf32>
    %27 = arith.mulf %24, %24 : vector<1x256xf32>
    %28 = arith.subf %26, %27 : vector<1x256xf32>
    %cst_32 = arith.constant 0.000000e+00 : f32
    %29 = vector.broadcast %cst_32 : f32 to vector<1x256xf32>
    %30 = arith.maximumf %28, %29 : vector<1x256xf32>
    %31 = vector.broadcast %24 : vector<1x256xf32> to vector<8x256xf32>
    %32 = arith.subf %1, %31 : vector<8x256xf32>
    %cst_33 = arith.constant 9.99999997E-7 : f32
    %33 = vector.broadcast %cst_33 : f32 to vector<1x256xf32>
    %34 = arith.addf %30, %33 : vector<1x256xf32>
    %35 = math.rsqrt %34 : vector<1x256xf32>
    %36 = vector.broadcast %35 : vector<1x256xf32> to vector<8x256xf32>
    %37 = arith.mulf %32, %36 : vector<8x256xf32>
    %38 = vector.broadcast %12 : vector<8x1xf32> to vector<8x256xf32>
    %39 = arith.mulf %38, %37 : vector<8x256xf32>
    %40 = vector.broadcast %13 : vector<8x1xf32> to vector<8x256xf32>
    %41 = arith.addf %39, %40 : vector<8x256xf32>
    %cst_34 = arith.constant dense<0.000000e+00> : vector<16x256xf32>
    %42 = tpu.matmul %7, %41, %cst_34 {dimension_numbers = #tpu.dot_dimension_numbers<[1], [0], [0], [1], [0, 0, 1, 1], [], []>} : vector<16x8xf32>, vector<8x256xf32>, vector<16x256xf32> -> vector<16x256xf32>
    %43 = vector.broadcast %14 : vector<16x1xf32> to vector<16x256xf32>
    %44 = arith.addf %42, %43 : vector<16x256xf32>
    %c16_i32 = arith.constant 16 : i32
    %45 = tpu.dynamic_rotate %44 by %c16_i32 dim 1 : vector<16x256xf32>, i32 -> vector<16x256xf32>
    %46 = vector.broadcast %3 : vector<1x256xf32> to vector<16x256xf32>
    %47 = arith.mulf %45, %46 : vector<16x256xf32>
    %c240_i32 = arith.constant 240 : i32
    %48 = tpu.dynamic_rotate %44 by %c240_i32 dim 1 : vector<16x256xf32>, i32 -> vector<16x256xf32>
    %49 = vector.broadcast %4 : vector<1x256xf32> to vector<16x256xf32>
    %50 = arith.mulf %48, %49 : vector<16x256xf32>
    %c4 = arith.constant 4 : index
    %c0_35 = arith.constant 0 : index
    %c0_36 = arith.constant 0 : index
    %51 = vector.load %arg5[%c4, %c0_35, %c0_36] : memref<9x16x1xf32, #tpu.memory_space<vmem>>, vector<1x16x1xf32>
    %52 = vector.shape_cast %51 : vector<1x16x1xf32> to vector<16x1xf32>
    %53 = vector.broadcast %52 : vector<16x1xf32> to vector<16x256xf32>
    %54 = arith.mulf %53, %44 : vector<16x256xf32>
    %c1_37 = arith.constant 1 : index
    %c0_38 = arith.constant 0 : index
    %c0_39 = arith.constant 0 : index
    %55 = vector.load %arg5[%c1_37, %c0_38, %c0_39] : memref<9x16x1xf32, #tpu.memory_space<vmem>>, vector<1x16x1xf32>
    %56 = vector.shape_cast %55 : vector<1x16x1xf32> to vector<16x1xf32>
    %57 = vector.broadcast %56 : vector<16x1xf32> to vector<16x256xf32>
    %58 = arith.mulf %57, %47 : vector<16x256xf32>
    %59 = arith.addf %54, %58 : vector<16x256xf32>
    %c7 = arith.constant 7 : index
    %c0_40 = arith.constant 0 : index
    %c0_41 = arith.constant 0 : index
    %60 = vector.load %arg5[%c7, %c0_40, %c0_41] : memref<9x16x1xf32, #tpu.memory_space<vmem>>, vector<1x16x1xf32>
    %61 = vector.shape_cast %60 : vector<1x16x1xf32> to vector<16x1xf32>
    %62 = vector.broadcast %61 : vector<16x1xf32> to vector<16x256xf32>
    %63 = arith.mulf %62, %50 : vector<16x256xf32>
    %64 = arith.addf %59, %63 : vector<16x256xf32>
    %c1_i32 = arith.constant 1 : i32
    %65 = tpu.dynamic_rotate %47 by %c1_i32 dim 1 : vector<16x256xf32>, i32 -> vector<16x256xf32>
    %66 = vector.broadcast %5 : vector<1x256xf32> to vector<16x256xf32>
    %67 = arith.mulf %65, %66 : vector<16x256xf32>
    %c255_i32 = arith.constant 255 : i32
    %68 = tpu.dynamic_rotate %47 by %c255_i32 dim 1 : vector<16x256xf32>, i32 -> vector<16x256xf32>
    %69 = vector.broadcast %6 : vector<1x256xf32> to vector<16x256xf32>
    %70 = arith.mulf %68, %69 : vector<16x256xf32>
    %c0_42 = arith.constant 0 : index
    %c0_43 = arith.constant 0 : index
    %c0_44 = arith.constant 0 : index
    %71 = vector.load %arg5[%c0_42, %c0_43, %c0_44] : memref<9x16x1xf32, #tpu.memory_space<vmem>>, vector<1x16x1xf32>
    %72 = vector.shape_cast %71 : vector<1x16x1xf32> to vector<16x1xf32>
    %73 = vector.broadcast %72 : vector<16x1xf32> to vector<16x256xf32>
    %74 = arith.mulf %73, %67 : vector<16x256xf32>
    %75 = arith.addf %64, %74 : vector<16x256xf32>
    %c2_45 = arith.constant 2 : index
    %c0_46 = arith.constant 0 : index
    %c0_47 = arith.constant 0 : index
    %76 = vector.load %arg5[%c2_45, %c0_46, %c0_47] : memref<9x16x1xf32, #tpu.memory_space<vmem>>, vector<1x16x1xf32>
    %77 = vector.shape_cast %76 : vector<1x16x1xf32> to vector<16x1xf32>
    %78 = vector.broadcast %77 : vector<16x1xf32> to vector<16x256xf32>
    %79 = arith.mulf %78, %70 : vector<16x256xf32>
    %80 = arith.addf %75, %79 : vector<16x256xf32>
    %c1_i32_48 = arith.constant 1 : i32
    %81 = tpu.dynamic_rotate %44 by %c1_i32_48 dim 1 : vector<16x256xf32>, i32 -> vector<16x256xf32>
    %82 = vector.broadcast %5 : vector<1x256xf32> to vector<16x256xf32>
    %83 = arith.mulf %81, %82 : vector<16x256xf32>
    %c255_i32_49 = arith.constant 255 : i32
    %84 = tpu.dynamic_rotate %44 by %c255_i32_49 dim 1 : vector<16x256xf32>, i32 -> vector<16x256xf32>
    %85 = vector.broadcast %6 : vector<1x256xf32> to vector<16x256xf32>
    %86 = arith.mulf %84, %85 : vector<16x256xf32>
    %c3_50 = arith.constant 3 : index
    %c0_51 = arith.constant 0 : index
    %c0_52 = arith.constant 0 : index
    %87 = vector.load %arg5[%c3_50, %c0_51, %c0_52] : memref<9x16x1xf32, #tpu.memory_space<vmem>>, vector<1x16x1xf32>
    %88 = vector.shape_cast %87 : vector<1x16x1xf32> to vector<16x1xf32>
    %89 = vector.broadcast %88 : vector<16x1xf32> to vector<16x256xf32>
    %90 = arith.mulf %89, %83 : vector<16x256xf32>
    %91 = arith.addf %80, %90 : vector<16x256xf32>
    %c5 = arith.constant 5 : index
    %c0_53 = arith.constant 0 : index
    %c0_54 = arith.constant 0 : index
    %92 = vector.load %arg5[%c5, %c0_53, %c0_54] : memref<9x16x1xf32, #tpu.memory_space<vmem>>, vector<1x16x1xf32>
    %93 = vector.shape_cast %92 : vector<1x16x1xf32> to vector<16x1xf32>
    %94 = vector.broadcast %93 : vector<16x1xf32> to vector<16x256xf32>
    %95 = arith.mulf %94, %86 : vector<16x256xf32>
    %96 = arith.addf %91, %95 : vector<16x256xf32>
    %c1_i32_55 = arith.constant 1 : i32
    %97 = tpu.dynamic_rotate %50 by %c1_i32_55 dim 1 : vector<16x256xf32>, i32 -> vector<16x256xf32>
    %98 = vector.broadcast %5 : vector<1x256xf32> to vector<16x256xf32>
    %99 = arith.mulf %97, %98 : vector<16x256xf32>
    %c255_i32_56 = arith.constant 255 : i32
    %100 = tpu.dynamic_rotate %50 by %c255_i32_56 dim 1 : vector<16x256xf32>, i32 -> vector<16x256xf32>
    %101 = vector.broadcast %6 : vector<1x256xf32> to vector<16x256xf32>
    %102 = arith.mulf %100, %101 : vector<16x256xf32>
    %c6 = arith.constant 6 : index
    %c0_57 = arith.constant 0 : index
    %c0_58 = arith.constant 0 : index
    %103 = vector.load %arg5[%c6, %c0_57, %c0_58] : memref<9x16x1xf32, #tpu.memory_space<vmem>>, vector<1x16x1xf32>
    %104 = vector.shape_cast %103 : vector<1x16x1xf32> to vector<16x1xf32>
    %105 = vector.broadcast %104 : vector<16x1xf32> to vector<16x256xf32>
    %106 = arith.mulf %105, %99 : vector<16x256xf32>
    %107 = arith.addf %96, %106 : vector<16x256xf32>
    %c8_59 = arith.constant 8 : index
    %c0_60 = arith.constant 0 : index
    %c0_61 = arith.constant 0 : index
    %108 = vector.load %arg5[%c8_59, %c0_60, %c0_61] : memref<9x16x1xf32, #tpu.memory_space<vmem>>, vector<1x16x1xf32>
    %109 = vector.shape_cast %108 : vector<1x16x1xf32> to vector<16x1xf32>
    %110 = vector.broadcast %109 : vector<16x1xf32> to vector<16x256xf32>
    %111 = arith.mulf %110, %102 : vector<16x256xf32>
    %112 = arith.addf %107, %111 : vector<16x256xf32>
    %113 = vector.broadcast %15 : vector<16x1xf32> to vector<16x256xf32>
    %114 = arith.addf %112, %113 : vector<16x256xf32>
    %115 = vector.extract_strided_slice %114 {offsets = [0, 0], sizes = [8, 256], strides = [1, 1]} : vector<16x256xf32> to vector<8x256xf32>
    %116 = vector.extract_strided_slice %114 {offsets = [8, 0], sizes = [8, 256], strides = [1, 1]} : vector<16x256xf32> to vector<8x256xf32>
    %117 = arith.mulf %115, %116 : vector<8x256xf32>
    %cst_62 = arith.constant dense<0.000000e+00> : vector<8xf32>
    %118 = vector.multi_reduction <add>, %117, %cst_62 [1] : vector<8x256xf32> to vector<8xf32>
    %119 = vector.shape_cast %118 : vector<8xf32> to vector<8x1xf32>
    %cst_63 = arith.constant 2.560000e+02 : f32
    %120 = vector.broadcast %cst_63 : f32 to vector<8x1xf32>
    %121 = arith.divf %119, %120 : vector<8x1xf32>
    %cst_64 = arith.constant dense<0.000000e+00> : vector<8x1xf32>
    %122 = tpu.matmul %8, %121, %cst_64 {dimension_numbers = #tpu.dot_dimension_numbers<[1], [0], [0], [1], [0, 0, 1, 1], [], []>} : vector<8x8xf32>, vector<8x1xf32>, vector<8x1xf32> -> vector<8x1xf32>
    %123 = arith.addf %122, %16 : vector<8x1xf32>
    %124 = vector.broadcast %123 : vector<8x1xf32> to vector<8x256xf32>
    %125 = arith.mulf %117, %124 : vector<8x256xf32>
    %cst_65 = arith.constant dense<0.000000e+00> : vector<8x256xf32>
    %126 = tpu.matmul %9, %125, %cst_65 {dimension_numbers = #tpu.dot_dimension_numbers<[1], [0], [0], [1], [0, 0, 1, 1], [], []>} : vector<8x8xf32>, vector<8x256xf32>, vector<8x256xf32> -> vector<8x256xf32>
    %127 = vector.broadcast %17 : vector<8x1xf32> to vector<8x256xf32>
    %128 = arith.addf %126, %127 : vector<8x256xf32>
    %129 = vector.broadcast %18 : vector<8x1xf32> to vector<8x256xf32>
    %130 = arith.mulf %128, %129 : vector<8x256xf32>
    %131 = arith.addf %1, %130 : vector<8x256xf32>
    %cst_66 = arith.constant dense<0.000000e+00> : vector<1x256xf32>
    %132 = tpu.matmul %2, %131, %cst_66 {dimension_numbers = #tpu.dot_dimension_numbers<[1], [0], [0], [1], [0, 0, 1, 1], [], []>} : vector<1x8xf32>, vector<8x256xf32>, vector<1x256xf32> -> vector<1x256xf32>
    %133 = arith.mulf %131, %131 : vector<8x256xf32>
    %cst_67 = arith.constant dense<0.000000e+00> : vector<1x256xf32>
    %134 = tpu.matmul %2, %133, %cst_67 {dimension_numbers = #tpu.dot_dimension_numbers<[1], [0], [0], [1], [0, 0, 1, 1], [], []>} : vector<1x8xf32>, vector<8x256xf32>, vector<1x256xf32> -> vector<1x256xf32>
    %135 = arith.mulf %132, %132 : vector<1x256xf32>
    %136 = arith.subf %134, %135 : vector<1x256xf32>
    %cst_68 = arith.constant 0.000000e+00 : f32
    %137 = vector.broadcast %cst_68 : f32 to vector<1x256xf32>
    %138 = arith.maximumf %136, %137 : vector<1x256xf32>
    %139 = vector.broadcast %132 : vector<1x256xf32> to vector<8x256xf32>
    %140 = arith.subf %131, %139 : vector<8x256xf32>
    %cst_69 = arith.constant 9.99999997E-7 : f32
    %141 = vector.broadcast %cst_69 : f32 to vector<1x256xf32>
    %142 = arith.addf %138, %141 : vector<1x256xf32>
    %143 = math.rsqrt %142 : vector<1x256xf32>
    %144 = vector.broadcast %143 : vector<1x256xf32> to vector<8x256xf32>
    %145 = arith.mulf %140, %144 : vector<8x256xf32>
    %146 = vector.broadcast %19 : vector<8x1xf32> to vector<8x256xf32>
    %147 = arith.mulf %146, %145 : vector<8x256xf32>
    %148 = vector.broadcast %20 : vector<8x1xf32> to vector<8x256xf32>
    %149 = arith.addf %147, %148 : vector<8x256xf32>
    %cst_70 = arith.constant dense<0.000000e+00> : vector<16x256xf32>
    %150 = tpu.matmul %10, %149, %cst_70 {dimension_numbers = #tpu.dot_dimension_numbers<[1], [0], [0], [1], [0, 0, 1, 1], [], []>} : vector<16x8xf32>, vector<8x256xf32>, vector<16x256xf32> -> vector<16x256xf32>
    %151 = vector.broadcast %21 : vector<16x1xf32> to vector<16x256xf32>
    %152 = arith.addf %150, %151 : vector<16x256xf32>
    %153 = vector.extract_strided_slice %152 {offsets = [0, 0], sizes = [8, 256], strides = [1, 1]} : vector<16x256xf32> to vector<8x256xf32>
    %154 = vector.extract_strided_slice %152 {offsets = [8, 0], sizes = [8, 256], strides = [1, 1]} : vector<16x256xf32> to vector<8x256xf32>
    %155 = arith.mulf %153, %154 : vector<8x256xf32>
    %cst_71 = arith.constant dense<0.000000e+00> : vector<8x256xf32>
    %156 = tpu.matmul %11, %155, %cst_71 {dimension_numbers = #tpu.dot_dimension_numbers<[1], [0], [0], [1], [0, 0, 1, 1], [], []>} : vector<8x8xf32>, vector<8x256xf32>, vector<8x256xf32> -> vector<8x256xf32>
    %157 = vector.broadcast %22 : vector<8x1xf32> to vector<8x256xf32>
    %158 = arith.addf %156, %157 : vector<8x256xf32>
    %159 = vector.broadcast %23 : vector<8x1xf32> to vector<8x256xf32>
    %160 = arith.mulf %158, %159 : vector<8x256xf32>
    %161 = arith.addf %131, %160 : vector<8x256xf32>
    %c0_72 = arith.constant 0 : index
    %c0_73 = arith.constant 0 : index
    %c0_74 = arith.constant 0 : index
    %162 = vector.load %arg7[%c0_72, %c0_73, %c0_74] : memref<1x8x256xf32, #tpu.memory_space<vmem>>, vector<1x8x256xf32>
    %163 = vector.shape_cast %162 : vector<1x8x256xf32> to vector<8x256xf32>
    %164 = vector.shape_cast %161 : vector<8x256xf32> to vector<1x8x256xf32>
    tpu.vector_store %arg7[%c0_72, %c0_73, %c0_74], %164 {strides = array<i32>} : memref<1x8x256xf32, #tpu.memory_space<vmem>>, vector<1x8x256xf32>,
    return
  }
  func.func @transform_0(%arg0: i32) -> (i32, i32, i32) {
    %c0_i32 = arith.constant 0 : i32
    %c0_i32_0 = arith.constant 0 : i32
    %c0_i32_1 = arith.constant 0 : i32
    return %arg0, %c0_i32, %c0_i32_0 : i32, i32, i32
  }
  func.func @transform_1(%arg0: i32) -> (i32, i32) {
    %c0_i32 = arith.constant 0 : i32
    %c0_i32_0 = arith.constant 0 : i32
    %c0_i32_1 = arith.constant 0 : i32
    return %c0_i32, %c0_i32_0 : i32, i32
  }
  func.func @transform_2(%arg0: i32) -> (i32, i32) {
    %c0_i32 = arith.constant 0 : i32
    %c0_i32_0 = arith.constant 0 : i32
    %c0_i32_1 = arith.constant 0 : i32
    return %c0_i32, %c0_i32_0 : i32, i32
  }
  func.func @transform_3(%arg0: i32) -> (i32, i32) {
    %c0_i32 = arith.constant 0 : i32
    %c0_i32_0 = arith.constant 0 : i32
    %c0_i32_1 = arith.constant 0 : i32
    return %c0_i32, %c0_i32_0 : i32, i32
  }
  func.func @transform_4(%arg0: i32) -> (i32, i32, i32) {
    %c0_i32 = arith.constant 0 : i32
    %c0_i32_0 = arith.constant 0 : i32
    %c0_i32_1 = arith.constant 0 : i32
    %c0_i32_2 = arith.constant 0 : i32
    return %c0_i32, %c0_i32_0, %c0_i32_1 : i32, i32, i32
  }
  func.func @transform_5(%arg0: i32) -> (i32, i32) {
    %c0_i32 = arith.constant 0 : i32
    %c0_i32_0 = arith.constant 0 : i32
    %c0_i32_1 = arith.constant 0 : i32
    return %c0_i32, %c0_i32_0 : i32, i32
  }
  func.func @transform_6(%arg0: i32) -> (i32, i32, i32) {
    %c0_i32 = arith.constant 0 : i32
    %c0_i32_0 = arith.constant 0 : i32
    %c0_i32_1 = arith.constant 0 : i32
    return %arg0, %c0_i32, %c0_i32_0 : i32, i32, i32
  }
}

</mosaic_0001>

<llo_original>
// kernel: tpu_custom_call.1
$region0: #{tpu_custom_call.1}
  #allocation0 [shape = 'u32[]', space=smem, size = 0x4, offset = 0x4, fixed_abs, tag = 'smem constant byte address 0x4 - core index']
  #allocation1 [shape = 'u32[144,128]{1,0:T(1,128)}', space=vmem, size = 0x12000, scoped, tag = 'internal scratch']
  %s0 = inlined_call_operand.vmem [shape: f32[2,8,256], index: 0, kind: input, shape index: {}]
  %s1 = inlined_call_operand.vmem [shape: f32[1,8], index: 1, kind: input, shape index: {}]
  %s2 = inlined_call_operand.vmem [shape: f32[4,256], index: 2, kind: input, shape index: {}]
  %s3 = inlined_call_operand.vmem [shape: f32[56,8], index: 3, kind: input, shape index: {}]
  %s4 = inlined_call_operand.vmem [shape: f32[9,16,1], index: 4, kind: input, shape index: {}]
  %s5 = inlined_call_operand.vmem [shape: f32[120,1], index: 5, kind: input, shape index: {}]
  %s6 = inlined_call_operand.hbm [shape: f32[2,8,256], index: 6, kind: output, shape index: {}]
  %s7 = sld [smem:[#allocation0]]
  $region57: #{tpu_custom_call.1} parent=0
    _
  %s9 = ssub.s32 1, %s7
  %s10 = scalar_select 0, %s9, %s7
  $region1: #{tpu_custom_call.1} parent=0
    #allocation2 [shape = 'u8[16384]{0}', space=vmem, size = 0x4000, scoped, tag = 'output window, operand 0']
    #allocation3 [shape = 's32[2]{0}', space=sflag, size = 0x8, scoped, tag = 'scoped memory for tpu_custom_call.1']
    %11 = vsyncpa [#allocation3], 0
    %s12 = scalar_lea.sflag [#allocation3], 1
    %13 = vsyncpa %s12, 0
    loop: start=0, step=1, limit=4
    $region2: #{tpu_custom_call.1} parent=1 // loop_pre_header
      _
    $region3: #{tpu_custom_call.1} parent=1 // loop_header
      %s15 = sphi 0, %s19
      %p16 = scmp.ge.s32.totalorder %s15, 4
      %s25 = sphi 0, %s27
      %s28 = sphi 0, %s25
      %s29 = sphi 0, %s28
      %s45 = sphi 0, %s29
      %s49 = sphi 0, %s49
      %s51 = sphi 0, %s49
      %s52 = sphi 0, %s51
      %s66 = sphi 0, %s52
      %s70 = sphi 0, %s70
      %s72 = sphi 0, %s70
      %s73 = sphi 0, %s72
      %s87 = sphi 0, %s73
      %s91 = sphi 0, %s91
      %s93 = sphi 0, %s91
      %s94 = sphi 0, %s93
      %s108 = sphi 0, %s94
      %s112 = sphi 0, %s112
      %s114 = sphi 0, %s112
      %s115 = sphi 0, %s114
      %s129 = sphi 0, %s115
      %s133 = sphi 0, %s133
      %s135 = sphi 0, %s133
      %s136 = sphi 0, %s135
      %s150 = sphi 0, %s136
      %s156 = sphi 0, %s158
      %s159 = sphi 0, %s156
      %s160 = sphi 0, %s159
      %s176 = sphi 0, %s160
    $region4: #{tpu_custom_call.1} parent=1 // loop_header_branch
      %18 = sbr.rel (%p16) target = $region8
    $region5: #{tpu_custom_call.1} parent=1 // loop_body
      %s20 = ssub.s32 %s15, 1
      %s21 = ssub.s32 %s15, 2
      %s22 = sadd.s32 %s15, 1
      %s23 = ssub.s32 %s15, %s22
      %p24 = scmp.eq.s32.totalorder %s23, 0
      %s26 = sadd.s32 %s25, 1
      %s27 = scalar_select %p24, %s25, %s26
      %p30 = pneg %p24
      %p31 = scmp.eq.s32.totalorder %s15, 1
      %p32 = por %p30, %p31
      %p33 = scmp.ne.s32.totalorder %s25, %s28
      %p34 = scmp.eq.s32.totalorder %s15, 0
      %p35 = por %p33, %p34
      %p36 = scmp.ne.s32.totalorder %s25, %s28
      %p37 = scmp.eq.s32.totalorder %s20, 1
      %p38 = por %p36, %p37
      %p39 = scmp.ne.s32.totalorder %s28, %s29
      %p40 = scmp.eq.s32.totalorder %s20, 0
      %p41 = por %p39, %p40
      %p42 = scmp.ne.s32.totalorder %s28, %s29
      %p43 = scmp.eq.s32.totalorder %s21, 1
      %p44 = por %p42, %p43
      %p46 = scmp.ne.s32.totalorder %s29, %s45
      %p47 = scmp.eq.s32.totalorder %s21, 0
      %p48 = por %p46, %p47
      %s50 = sadd.s32 %s49, 1
      %p53 = scmp.eq.s32.totalorder %s15, 1
      %p54 = scmp.ne.s32.totalorder %s49, %s51
      %p55 = scmp.eq.s32.totalorder %s15, 0
      %p56 = por %p54, %p55
      %p57 = scmp.ne.s32.totalorder %s49, %s51
      %p58 = scmp.eq.s32.totalorder %s20, 1
      %p59 = por %p57, %p58
      %p60 = scmp.ne.s32.totalorder %s51, %s52
      %p61 = scmp.eq.s32.totalorder %s20, 0
      %p62 = por %p60, %p61
      %p63 = scmp.ne.s32.totalorder %s51, %s52
      %p64 = scmp.eq.s32.totalorder %s21, 1
      %p65 = por %p63, %p64
      %p67 = scmp.ne.s32.totalorder %s52, %s66
      %p68 = scmp.eq.s32.totalorder %s21, 0
      %p69 = por %p67, %p68
      %s71 = sadd.s32 %s70, 1
      %p74 = scmp.eq.s32.totalorder %s15, 1
      %p75 = scmp.ne.s32.totalorder %s70, %s72
      %p76 = scmp.eq.s32.totalorder %s15, 0
      %p77 = por %p75, %p76
      %p78 = scmp.ne.s32.totalorder %s70, %s72
      %p79 = scmp.eq.s32.totalorder %s20, 1
      %p80 = por %p78, %p79
      %p81 = scmp.ne.s32.totalorder %s72, %s73
      %p82 = scmp.eq.s32.totalorder %s20, 0
      %p83 = por %p81, %p82
      %p84 = scmp.ne.s32.totalorder %s72, %s73
      %p85 = scmp.eq.s32.totalorder %s21, 1
      %p86 = por %p84, %p85
      %p88 = scmp.ne.s32.totalorder %s73, %s87
      %p89 = scmp.eq.s32.totalorder %s21, 0
      %p90 = por %p88, %p89
      %s92 = sadd.s32 %s91, 1
      %p95 = scmp.eq.s32.totalorder %s15, 1
      %p96 = scmp.ne.s32.totalorder %s91, %s93
      %p97 = scmp.eq.s32.totalorder %s15, 0
      %p98 = por %p96, %p97
      %p99 = scmp.ne.s32.totalorder %s91, %s93
      %p100 = scmp.eq.s32.totalorder %s20, 1
      %p101 = por %p99, %p100
      %p102 = scmp.ne.s32.totalorder %s93, %s94
      %p103 = scmp.eq.s32.totalorder %s20, 0
      %p104 = por %p102, %p103
      %p105 = scmp.ne.s32.totalorder %s93, %s94
      %p106 = scmp.eq.s32.totalorder %s21, 1
      %p107 = por %p105, %p106
      %p109 = scmp.ne.s32.totalorder %s94, %s108
      %p110 = scmp.eq.s32.totalorder %s21, 0
      %p111 = por %p109, %p110
      %s113 = sadd.s32 %s112, 1
      %p116 = scmp.eq.s32.totalorder %s15, 1
      %p117 = scmp.ne.s32.totalorder %s112, %s114
      %p118 = scmp.eq.s32.totalorder %s15, 0
      %p119 = por %p117, %p118
      %p120 = scmp.ne.s32.totalorder %s112, %s114
      %p121 = scmp.eq.s32.totalorder %s20, 1
      %p122 = por %p120, %p121
      %p123 = scmp.ne.s32.totalorder %s114, %s115
      %p124 = scmp.eq.s32.totalorder %s20, 0
      %p125 = por %p123, %p124
      %p126 = scmp.ne.s32.totalorder %s114, %s115
      %p127 = scmp.eq.s32.totalorder %s21, 1
      %p128 = por %p126, %p127
      %p130 = scmp.ne.s32.totalorder %s115, %s129
      %p131 = scmp.eq.s32.totalorder %s21, 0
      %p132 = por %p130, %p131
      %s134 = sadd.s32 %s133, 1
      %p137 = scmp.eq.s32.totalorder %s15, 1
      %p138 = scmp.ne.s32.totalorder %s133, %s135
      %p139 = scmp.eq.s32.totalorder %s15, 0
      %p140 = por %p138, %p139
      %p141 = scmp.ne.s32.totalorder %s133, %s135
      %p142 = scmp.eq.s32.totalorder %s20, 1
      %p143 = por %p141, %p142
      %p144 = scmp.ne.s32.totalorder %s135, %s136
      %p145 = scmp.eq.s32.totalorder %s20, 0
      %p146 = por %p144, %p145
      %p147 = scmp.ne.s32.totalorder %s135, %s136
      %p148 = scmp.eq.s32.totalorder %s21, 1
      %p149 = por %p147, %p148
      %p151 = scmp.ne.s32.totalorder %s136, %s150
      %p152 = scmp.eq.s32.totalorder %s21, 0
      %p153 = por %p151, %p152
      %s154 = ssub.s32 %s15, %s22
      %p155 = scmp.eq.s32.totalorder %s154, 0
      %s157 = sadd.s32 %s156, 1
      %s158 = scalar_select %p155, %s156, %s157
      %p161 = pneg %p155
      %p162 = scmp.eq.s32.totalorder %s15, 1
      %p163 = por %p161, %p162
      %p164 = scmp.ne.s32.totalorder %s156, %s159
      %p165 = scmp.eq.s32.totalorder %s15, 0
      %p166 = por %p164, %p165
      %p167 = scmp.ne.s32.totalorder %s156, %s159
      %p168 = scmp.eq.s32.totalorder %s20, 1
      %p169 = por %p167, %p168
      %p170 = scmp.ne.s32.totalorder %s159, %s160
      %p171 = scmp.eq.s32.totalorder %s20, 0
      %p172 = por %p170, %p171
      %p173 = scmp.ne.s32.totalorder %s159, %s160
      %p174 = scmp.eq.s32.totalorder %s21, 1
      %p175 = por %p173, %p174
      %p177 = scmp.ne.s32.totalorder %s160, %s176
      %p178 = scmp.eq.s32.totalorder %s21, 0
      %p179 = por %p177, %p178
      %p180 = scmp.le.s32.totalorder 1, %s15
      %p181 = scmp.lt.s32.totalorder %s15, 3
      %p182 = pnand %p180, %p181
      %p183 = pneg %p182
      // Predicated region
      $region9: #{tpu_custom_call.1} parent=5 // pred_check
        _
      $region10: #{tpu_custom_call.1} parent=5 // pred_check_branch
        %185 = sbr.rel (%p182) target = $region12
      $region11: #{tpu_custom_call.1} parent=5 // pred_region
        %s186 = ssub.s32 %s15, 1
        // Predicated region
        $region13: #{tpu_custom_call.1} parent=11 // pred_check
          %p187 = pneg %p62
        $region14: #{tpu_custom_call.1} parent=11 // pred_check_branch
          %189 = sbr.rel (%p187) target = $region16
        $region15: #{tpu_custom_call.1} parent=11 // pred_region
          _
        $region16: #{tpu_custom_call.1} parent=11 // pred_fallthru
          _
        // Predicated region
        $region17: #{tpu_custom_call.1} parent=11 // pred_check
          %p190 = pneg %p83
        $region18: #{tpu_custom_call.1} parent=11 // pred_check_branch
          %192 = sbr.rel (%p190) target = $region20
        $region19: #{tpu_custom_call.1} parent=11 // pred_region
          _
        $region20: #{tpu_custom_call.1} parent=11 // pred_fallthru
          _
        // Predicated region
        $region21: #{tpu_custom_call.1} parent=11 // pred_check
          %p193 = pneg %p104
        $region22: #{tpu_custom_call.1} parent=11 // pred_check_branch
          %195 = sbr.rel (%p193) target = $region24
        $region23: #{tpu_custom_call.1} parent=11 // pred_region
          _
        $region24: #{tpu_custom_call.1} parent=11 // pred_fallthru
          _
        // Predicated region
        $region25: #{tpu_custom_call.1} parent=11 // pred_check
          %p196 = pneg %p125
        $region26: #{tpu_custom_call.1} parent=11 // pred_check_branch
          %198 = sbr.rel (%p196) target = $region28
        $region27: #{tpu_custom_call.1} parent=11 // pred_region
          _
        $region28: #{tpu_custom_call.1} parent=11 // pred_fallthru
          _
        // Predicated region
        $region29: #{tpu_custom_call.1} parent=11 // pred_check
          %p199 = pneg %p146
        $region30: #{tpu_custom_call.1} parent=11 // pred_check_branch
          %201 = sbr.rel (%p199) target = $region32
        $region31: #{tpu_custom_call.1} parent=11 // pred_region
          _
        $region32: #{tpu_custom_call.1} parent=11 // pred_fallthru
          _
      $region12: #{tpu_custom_call.1} parent=5 // pred_fallthru
        _
      %p202 = scmp.lt.s32.totalorder %s15, 2
      // Predicated region
      $region33: #{tpu_custom_call.1} parent=5 // pred_check
        %p203 = pneg %p202
      $region34: #{tpu_custom_call.1} parent=5 // pred_check_branch
        %205 = sbr.rel (%p203) target = $region36
      $region35: #{tpu_custom_call.1} parent=5 // pred_region
        // Predicated region
        $region37: #{tpu_custom_call.1} parent=35 // pred_check
          %p206 = pneg %p35
        $region38: #{tpu_custom_call.1} parent=35 // pred_check_branch
          %208 = sbr.rel (%p206) target = $region40
        $region39: #{tpu_custom_call.1} parent=35 // pred_region
          %p209 = scmp.lt.s32.totalorder %s15, 1
          %s210 = scalar_select %p209, %s15, 1
          %s211 = smul.addr %s210, 2
          %s212 = smul.addr %s211, 8
          %s213 = scalar_lea.vmem %s0, %s212
        $region40: #{tpu_custom_call.1} parent=35 // pred_fallthru
          _
      $region36: #{tpu_custom_call.1} parent=5 // pred_fallthru
        _
      %p214 = scmp.le.s32.totalorder 1, %s15
      %p215 = scmp.lt.s32.totalorder %s15, 3
      %p216 = pnand %p214, %p215
      %p217 = pneg %p216
      // Predicated region
      $region41: #{tpu_custom_call.1} parent=5 // pred_check
        _
      $region42: #{tpu_custom_call.1} parent=5 // pred_check_branch
        %219 = sbr.rel (%p216) target = $region44
      $region43: #{tpu_custom_call.1} parent=5 // pred_region
        %s220 = ssub.s32 %s15, 1
        %p221 = scmp.lt.s32.totalorder %s20, 1
        %s222 = scalar_select %p221, %s20, 1
        %s223 = smul.addr %s222, 2
        %s224 = smul.addr %s223, 8
        %s225 = scalar_lea.vmem %s0, %s224
        %p226 = pneg %p41
        %p227 = pneg %p38
        %p228 = pneg %p62
        %p229 = pneg %p59
        %p230 = pneg %p83
        %p231 = pneg %p80
        %p232 = pneg %p104
        %p233 = pneg %p101
        %p234 = pneg %p125
        %p235 = pneg %p122
        %p236 = pneg %p146
        %p237 = pneg %p143
        %p238 = pneg %p172
        %p239 = pneg %p169
        %s240 = sand.u32 %s159, 1
        %s241 = scalar_lea.sflag [#allocation3], %s240
        %s242 = sand.u32 %s159, 1
        %s243 = smul.addr %s242, 16
        %s244 = scalar_lea.vmem [#allocation2], %s243
        %p245 = scmp.lt.s32.totalorder %s20, 1
        %s246 = scalar_select %p245, %s20, 1
        %s247 = smul.addr %s246, 2
        %s248 = smul.addr %s247, 8
        %s249 = scalar_lea.vmem %s0, %s248
        %v250 = vld [vmem:[%s249] sm:$0xff]
        %v251 = vld [vmem:[%s249 + $0x8] sm:$0xff]
        %v252 = vld [vmem:[%s1] sm:$0x1]
        %v253 = vld [vmem:[%s2] ss:$4 sm:$0x3]
        %s254 = scalar_lea.vmem %s2, 1
        %v255 = vld [vmem:[%s254] ss:$4 sm:$0x3]
        %s256 = scalar_lea.vmem %s2, 2
        %v257 = vld [vmem:[%s256] ss:$4 sm:$0x3]
        %s258 = scalar_lea.vmem %s2, 3
        %v259 = vld [vmem:[%s258] ss:$4 sm:$0x3]
        %v260 = vld [vmem:[%s3] sm:$0xff]
        %v261 = vld [vmem:[%s3 + $0x8] sm:$0xff]
        %v262 = vld [vmem:[%s3 + $0x10] sm:$0xff]
        %v263 = vld [vmem:[%s3 + $0x18] sm:$0xff]
        %v264 = vld [vmem:[%s3 + $0x20] sm:$0xff]
        %v265 = vld [vmem:[%s3 + $0x28] sm:$0xff]
        %v266 = vld [vmem:[%s3 + $0x30] sm:$0xff]
        %v267 = vld [vmem:[%s5] sm:$0xff]
        %v268 = vld [vmem:[%s5 + $0x8] sm:$0xff]
        %v269 = vld [vmem:[%s5 + $0x10] sm:$0xff]
        %v270 = vld [vmem:[%s5 + $0x18] sm:$0xff]
        %v271 = vld [vmem:[%s5 + $0x20] sm:$0xff]
        %v272 = vld [vmem:[%s5 + $0x28] sm:$0xff]
        %v273 = vld [vmem:[%s5 + $0x30] sm:$0xff]
        %v274 = vld [vmem:[%s5 + $0x38] sm:$0xff]
        %v275 = vld [vmem:[%s5 + $0x40] sm:$0xff]
        %v276 = vld [vmem:[%s5 + $0x48] sm:$0xff]
        %v277 = vld [vmem:[%s5 + $0x50] sm:$0xff]
        %v278 = vld [vmem:[%s5 + $0x58] sm:$0xff]
        %v279 = vld [vmem:[%s5 + $0x60] sm:$0xff]
        %v280 = vld [vmem:[%s5 + $0x68] sm:$0xff]
        %v281 = vld [vmem:[%s5 + $0x70] sm:$0xff]
        %vm282 = vcmask 64512
        %v284 = vsel %vm282, %v252, 0
        %286 = vmatprep.subr.mxu0 0.0
        %287 = vmatpush1.msra.mxu0 0.0
        %288 = vmatprep.subr.mxu0 0.0
        %289 = vmatpush1.msra.mxu0 0.0
        %290 = vmatprep.subr.mxu0 0.0
        %291 = vmatpush1.msra.mxu0 0.0
        %292 = vmatprep.subr.mxu0 0.0
        %293 = vmatpush1.msra.mxu0 0.0
        %294 = vmatprep.subr.mxu0 0.0
        %295 = vmatpush1.msra.mxu0 0.0
        %296 = vmatprep.subr.mxu0 0.0
        %297 = vmatpush1.msra.mxu0 0.0
        %298 = vmatprep.subr.mxu0 0.0
        %299 = vmatpush1.msra.mxu0 0.0
        %300 = vmatprep.subr.mxu0 0.0
        %301 = vmatpush1.msra.mxu0 0.0
        %302 = vmatprep.subr.mxu0 0.0
        %303 = vmatpush1.msra.mxu0 0.0
        %304 = vmatprep.subr.mxu0 0.0
        %305 = vmatpush1.msra.mxu0 0.0
        %306 = vmatprep.subr.mxu0 0.0
        %307 = vmatpush1.msra.mxu0 0.0
        %308 = vmatprep.subr.mxu0 0.0
        %309 = vmatpush1.msra.mxu0 0.0
        %310 = vmatprep.subr.mxu0 0.0
        %311 = vmatpush1.msra.mxu0 0.0
        %312 = vmatprep.subr.mxu0 0.0
        %313 = vmatpush1.msra.mxu0 0.0
        %314 = vmatprep.subr.mxu0 0.0
        %315 = vmatpush1.msra.mxu0 0.0
        %316 = vmatprep.subr.mxu0 %v251
        %317 = vmatpush1.msra.mxu0 %v250
        %318 = vmatprep.subr.mxu0 0.0
        %319 = vmatpush2.msra.mxu0 0.0
        %320 = vmatprep.subr.mxu0 0.0
        %321 = vmatpush2.msra.mxu0 0.0
        %322 = vmatprep.subr.mxu0 0.0
        %323 = vmatpush2.msra.mxu0 0.0
        %324 = vmatprep.subr.mxu0 0.0
        %325 = vmatpush2.msra.mxu0 0.0
        %326 = vmatprep.subr.mxu0 0.0
        %327 = vmatpush2.msra.mxu0 0.0
        %328 = vmatprep.subr.mxu0 0.0
        %329 = vmatpush2.msra.mxu0 0.0
        %330 = vmatprep.subr.mxu0 0.0
        %331 = vmatpush2.msra.mxu0 0.0
        %332 = vmatprep.subr.mxu0 0.0
        %333 = vmatpush2.msra.mxu0 0.0
        %334 = vmatprep.subr.mxu0 0.0
        %335 = vmatpush2.msra.mxu0 0.0
        %336 = vmatprep.subr.mxu0 0.0
        %337 = vmatpush2.msra.mxu0 0.0
        %338 = vmatprep.subr.mxu0 0.0
        %339 = vmatpush2.msra.mxu0 0.0
        %340 = vmatprep.subr.mxu0 0.0
        %341 = vmatpush2.msra.mxu0 0.0
        %342 = vmatprep.subr.mxu0 0.0
        %343 = vmatpush2.msra.mxu0 0.0
        %344 = vmatprep.subr.mxu0 0.0
        %345 = vmatpush2.msra.mxu0 0.0
        %346 = vmatprep.subr.mxu0 0.0
        %347 = vmatpush2.msra.mxu0 0.0
        %348 = vmatprep.subr.mxu0 0.0
        %349 = vmatpush2.msra.mxu0 0.0
        %350 = vmatprep.mubr.f32.mxu0 0.0
        %351 = vmatmul.mubr.f32.gmra.mxu0 %v284
        %v352 = vpop.f32.mrf.mxu0
        %v353 = vadd.f32 0.0, %v352
        %v354 = vpop.f32.mrf.mxu0
        %v355 = vadd.f32 0.0, %v354
        %356 = vdwg.mxu0
        %v357 = vmul.f32 %v250, %v250
        %v358 = vmul.f32 %v251, %v251
        %359 = vmatprep.subr.mxu0 0.0
        %360 = vmatpush1.msra.mxu0 0.0
        %361 = vmatprep.subr.mxu0 0.0
        %362 = vmatpush1.msra.mxu0 0.0
        %363 = vmatprep.subr.mxu0 0.0
        %364 = vmatpush1.msra.mxu0 0.0
        %365 = vmatprep.subr.mxu0 0.0
        %366 = vmatpush1.msra.mxu0 0.0
        %367 = vmatprep.subr.mxu0 0.0
        %368 = vmatpush1.msra.mxu0 0.0
        %369 = vmatprep.subr.mxu0 0.0
        %370 = vmatpush1.msra.mxu0 0.0
        %371 = vmatprep.subr.mxu0 0.0
        %372 = vmatpush1.msra.mxu0 0.0
        %373 = vmatprep.subr.mxu0 0.0
        %374 = vmatpush1.msra.mxu0 0.0
        %375 = vmatprep.subr.mxu0 0.0
        %376 = vmatpush1.msra.mxu0 0.0
        %377 = vmatprep.subr.mxu0 0.0
        %378 = vmatpush1.msra.mxu0 0.0
        %379 = vmatprep.subr.mxu0 0.0
        %380 = vmatpush1.msra.mxu0 0.0
        %381 = vmatprep.subr.mxu0 0.0
        %382 = vmatpush1.msra.mxu0 0.0
        %383 = vmatprep.subr.mxu0 0.0
        %384 = vmatpush1.msra.mxu0 0.0
        %385 = vmatprep.subr.mxu0 0.0
        %386 = vmatpush1.msra.mxu0 0.0
        %387 = vmatprep.subr.mxu0 0.0
        %388 = vmatpush1.msra.mxu0 0.0
        %389 = vmatprep.subr.mxu0 %v358
        %390 = vmatpush1.msra.mxu0 %v357
        %391 = vmatprep.subr.mxu0 0.0
        %392 = vmatpush2.msra.mxu0 0.0
        %393 = vmatprep.subr.mxu0 0.0
        %394 = vmatpush2.msra.mxu0 0.0
        %395 = vmatprep.subr.mxu0 0.0
        %396 = vmatpush2.msra.mxu0 0.0
        %397 = vmatprep.subr.mxu0 0.0
        %398 = vmatpush2.msra.mxu0 0.0
        %399 = vmatprep.subr.mxu0 0.0
        %400 = vmatpush2.msra.mxu0 0.0
        %401 = vmatprep.subr.mxu0 0.0
        %402 = vmatpush2.msra.mxu0 0.0
        %403 = vmatprep.subr.mxu0 0.0
        %404 = vmatpush2.msra.mxu0 0.0
        %405 = vmatprep.subr.mxu0 0.0
        %406 = vmatpush2.msra.mxu0 0.0
        %407 = vmatprep.subr.mxu0 0.0
        %408 = vmatpush2.msra.mxu0 0.0
        %409 = vmatprep.subr.mxu0 0.0
        %410 = vmatpush2.msra.mxu0 0.0
        %411 = vmatprep.subr.mxu0 0.0
        %412 = vmatpush2.msra.mxu0 0.0
        %413 = vmatprep.subr.mxu0 0.0
        %414 = vmatpush2.msra.mxu0 0.0
        %415 = vmatprep.subr.mxu0 0.0
        %416 = vmatpush2.msra.mxu0 0.0
        %417 = vmatprep.subr.mxu0 0.0
        %418 = vmatpush2.msra.mxu0 0.0
        %419 = vmatprep.subr.mxu0 0.0
        %420 = vmatpush2.msra.mxu0 0.0
        %421 = vmatprep.subr.mxu0 0.0
        %422 = vmatpush2.msra.mxu0 0.0
        %423 = vmatprep.mubr.f32.mxu0 0.0
        %424 = vmatmul.mubr.f32.gmra.mxu0 %v284
        %v425 = vpop.f32.mrf.mxu0
        %v426 = vadd.f32 0.0, %v425
        %v427 = vpop.f32.mrf.mxu0
        %v428 = vadd.f32 0.0, %v427
        %429 = vdwg.mxu0
        %v430 = vmul.f32 %v353, %v353
        %v431 = vmul.f32 %v355, %v355
        %v432 = vsub.f32 %v426, %v430
        %v433 = vsub.f32 %v428, %v431
        %v434 = vmax.f32 %v432, 0.0
        %v435 = vmax.f32 %v433, 0.0
        %v436 = vlaneseq
        %v437 = vshrl.u32 %v436, 7
        %v438 = vsub.s32 0, %v437
        %v439 = vrot.slane %v353, %v438
        %v440 = vlaneseq
        %v441 = vshrl.u32 %v440, 7
        %v442 = vsub.s32 0, %v441
        %v443 = vrot.slane %v355, %v442
        %v444 = vsub.f32 %v250, %v439
        %v445 = vsub.f32 %v251, %v443
        %v446 = vadd.f32 %v434, 1e-06
        %v447 = vadd.f32 %v435, 1e-06
        %v448 = vrsqrt.pop %v446
        %v449 = vrsqrt.pop %v447
        %v450 = vlaneseq
        %v451 = vshrl.u32 %v450, 7
        %v452 = vsub.s32 0, %v451
        %v453 = vrot.slane %v448, %v452
        %v454 = vlaneseq
        %v455 = vshrl.u32 %v454, 7
        %v456 = vsub.s32 0, %v455
        %v457 = vrot.slane %v449, %v456
        %v458 = vmul.f32 %v444, %v453
        %v459 = vmul.f32 %v445, %v457
        %461 = vset.pattern.permute.xlu0 0
        %462 = vperm.xlu0 %461, %v267
        %v463 = vpop.permute.xlu0 %462
        %v465 = vmul.f32 %v463, %v458
        %v466 = vmul.f32 %v463, %v459
        %468 = vset.pattern.permute.xlu0 0
        %469 = vperm.xlu0 %468, %v268
        %v470 = vpop.permute.xlu0 %469
        %v472 = vadd.f32 %v465, %v470
        %v473 = vadd.f32 %v466, %v470
        %475 = vset.pattern.permute.xlu0 0
        %476 = vperm.xlu0 %475, %v269
        %v477 = vpop.permute.xlu0 %476
        %480 = vset.pattern.permute.xlu0 0
        %481 = vperm.xlu0 %480, %v270
        %v482 = vpop.permute.xlu0 %481
        %v485 = vsel %vm282, %v260, 0
        %v488 = vsel %vm282, %v261, 0
        %490 = vmatprep.subr.mxu0 0.0
        %491 = vmatpush1.msra.mxu0 0.0
        %492 = vmatprep.subr.mxu0 0.0
        %493 = vmatpush1.msra.mxu0 0.0
        %494 = vmatprep.subr.mxu0 0.0
        %495 = vmatpush1.msra.mxu0 0.0
        %496 = vmatprep.subr.mxu0 0.0
        %497 = vmatpush1.msra.mxu0 0.0
        %498 = vmatprep.subr.mxu0 0.0
        %499 = vmatpush1.msra.mxu0 0.0
        %500 = vmatprep.subr.mxu0 0.0
        %501 = vmatpush1.msra.mxu0 0.0
        %502 = vmatprep.subr.mxu0 0.0
        %503 = vmatpush1.msra.mxu0 0.0
        %504 = vmatprep.subr.mxu0 0.0
        %505 = vmatpush1.msra.mxu0 0.0
        %506 = vmatprep.subr.mxu0 0.0
        %507 = vmatpush1.msra.mxu0 0.0
        %508 = vmatprep.subr.mxu0 0.0
        %509 = vmatpush1.msra.mxu0 0.0
        %510 = vmatprep.subr.mxu0 0.0
        %511 = vmatpush1.msra.mxu0 0.0
        %512 = vmatprep.subr.mxu0 0.0
        %513 = vmatpush1.msra.mxu0 0.0
        %514 = vmatprep.subr.mxu0 0.0
        %515 = vmatpush1.msra.mxu0 0.0
        %516 = vmatprep.subr.mxu0 0.0
        %517 = vmatpush1.msra.mxu0 0.0
        %518 = vmatprep.subr.mxu0 0.0
        %519 = vmatpush1.msra.mxu0 0.0
        %520 = vmatprep.subr.mxu0 %v473
        %521 = vmatpush1.msra.mxu0 %v472
        %522 = vmatprep.subr.mxu0 0.0
        %523 = vmatpush2.msra.mxu0 0.0
        %524 = vmatprep.subr.mxu0 0.0
        %525 = vmatpush2.msra.mxu0 0.0
        %526 = vmatprep.subr.mxu0 0.0
        %527 = vmatpush2.msra.mxu0 0.0
        %528 = vmatprep.subr.mxu0 0.0
        %529 = vmatpush2.msra.mxu0 0.0
        %530 = vmatprep.subr.mxu0 0.0
        %531 = vmatpush2.msra.mxu0 0.0
        %532 = vmatprep.subr.mxu0 0.0
        %533 = vmatpush2.msra.mxu0 0.0
        %534 = vmatprep.subr.mxu0 0.0
        %535 = vmatpush2.msra.mxu0 0.0
        %536 = vmatprep.subr.mxu0 0.0
        %537 = vmatpush2.msra.mxu0 0.0
        %538 = vmatprep.subr.mxu0 0.0
        %539 = vmatpush2.msra.mxu0 0.0
        %540 = vmatprep.subr.mxu0 0.0
        %541 = vmatpush2.msra.mxu0 0.0
        %542 = vmatprep.subr.mxu0 0.0
        %543 = vmatpush2.msra.mxu0 0.0
        %544 = vmatprep.subr.mxu0 0.0
        %545 = vmatpush2.msra.mxu0 0.0
        %546 = vmatprep.subr.mxu0 0.0
        %547 = vmatpush2.msra.mxu0 0.0
        %548 = vmatprep.subr.mxu0 0.0
        %549 = vmatpush2.msra.mxu0 0.0
        %550 = vmatprep.subr.mxu0 0.0
        %551 = vmatpush2.msra.mxu0 0.0
        %552 = vmatprep.subr.mxu0 0.0
        %553 = vmatpush2.msra.mxu0 0.0
        %554 = vmatprep.mubr.f32.mxu0 0.0
        %555 = vmatmul.mubr.f32.gmra.mxu0 %v485
        %v556 = vpop.f32.mrf.mxu0
        %v557 = vadd.f32 %v477, %v556
        %v558 = vpop.f32.mrf.mxu0
        %v559 = vadd.f32 %v477, %v558
        %560 = vmatprep.mubr.f32.mxu0 0.0
        %561 = vmatmul.mubr.f32.gmra.mxu0 %v488
        %v562 = vpop.f32.mrf.mxu0
        %v563 = vadd.f32 %v482, %v562
        %v564 = vpop.f32.mrf.mxu0
        %v565 = vadd.f32 %v482, %v564
        %566 = vdwg.mxu0
        %567 = vrot.lane.b32.xlu0 %v557, 16
        %v568 = vpop.permute.xlu0 %567
        %569 = vrot.lane.b32.xlu0 %v563, 16
        %v570 = vpop.permute.xlu0 %569
        %571 = vrot.lane.b32.xlu0 %v559, 16
        %v572 = vpop.permute.xlu0 %571
        %573 = vrot.lane.b32.xlu0 %v565, 16
        %v574 = vpop.permute.xlu0 %573
        %v575 = vlaneseq
        %v576 = vand.u32 %v575, 127
        %vm577 = vcmp.lt.s32.totalorder %v576, 16
        %v578 = vsel %vm577, %v568, %v572
        %v579 = vsel %vm577, %v570, %v574
        %v580 = vsel %vm577, %v572, %v568
        %v581 = vsel %vm577, %v574, %v570
        %v583 = vlaneseq
        %v584 = vshrl.u32 %v583, 7
        %v585 = vsub.s32 0, %v584
        %v586 = vrot.slane %v253, %v585
        %v587 = vlaneseq
        %v588 = vshrl.u32 %v587, 7
        %v589 = vsub.s32 1, %v588
        %v590 = vrot.slane %v253, %v589
        %v593 = vmul.f32 %v580, %v586
        %v594 = vmul.f32 %v578, %v590
        %v595 = vmul.f32 %v581, %v586
        %v596 = vmul.f32 %v579, %v590
        %597 = vrot.lane.b32.xlu0 %v557, 112
        %v598 = vpop.permute.xlu0 %597
        %599 = vrot.lane.b32.xlu0 %v563, 112
        %v600 = vpop.permute.xlu0 %599
        %601 = vrot.lane.b32.xlu0 %v559, 112
        %v602 = vpop.permute.xlu0 %601
        %603 = vrot.lane.b32.xlu0 %v565, 112
        %v604 = vpop.permute.xlu0 %603
        %vm605 = vcmp.lt.s32.totalorder %v576, 112
        %v606 = vsel %vm605, %v598, %v602
        %v607 = vsel %vm605, %v600, %v604
        %v608 = vsel %vm605, %v602, %v598
        %v609 = vsel %vm605, %v604, %v600
        %v611 = vlaneseq
        %v612 = vshrl.u32 %v611, 7
        %v613 = vsub.s32 0, %v612
        %v614 = vrot.slane %v255, %v613
        %v615 = vlaneseq
        %v616 = vshrl.u32 %v615, 7
        %v617 = vsub.s32 1, %v616
        %v618 = vrot.slane %v255, %v617
        %v621 = vmul.f32 %v606, %v614
        %v622 = vmul.f32 %v608, %v618
        %v623 = vmul.f32 %v607, %v614
        %v624 = vmul.f32 %v609, %v618
        %s625 = scalar_lea.vmem %s4, 64
        %v626 = vld [vmem:[%s625] sm:$0xff]
        %v627 = vld [vmem:[%s625 + $0x8] sm:$0xff]
        %629 = vset.pattern.permute.xlu0 0
        %630 = vperm.xlu0 %629, %v626
        %v631 = vpop.permute.xlu0 %630
        %634 = vset.pattern.permute.xlu0 0
        %635 = vperm.xlu0 %634, %v627
        %v636 = vpop.permute.xlu0 %635
        %v638 = vmul.f32 %v631, %v557
        %v639 = vmul.f32 %v631, %v559
        %v640 = vmul.f32 %v636, %v563
        %v641 = vmul.f32 %v636, %v565
        %s642 = scalar_lea.vmem %s4, 16
        %v643 = vld [vmem:[%s642] sm:$0xff]
        %v644 = vld [vmem:[%s642 + $0x8] sm:$0xff]
        %646 = vset.pattern.permute.xlu0 0
        %647 = vperm.xlu0 %646, %v643
        %v648 = vpop.permute.xlu0 %647
        %651 = vset.pattern.permute.xlu0 0
        %652 = vperm.xlu0 %651, %v644
        %v653 = vpop.permute.xlu0 %652
        %v655 = vmul.f32 %v648, %v593
        %v656 = vmul.f32 %v648, %v594
        %v657 = vmul.f32 %v653, %v595
        %v658 = vmul.f32 %v653, %v596
        %v659 = vadd.f32 %v638, %v655
        %v660 = vadd.f32 %v639, %v656
        %v661 = vadd.f32 %v640, %v657
        %v662 = vadd.f32 %v641, %v658
        %s663 = scalar_lea.vmem %s4, 112
        %v664 = vld [vmem:[%s663] sm:$0xff]
        %v665 = vld [vmem:[%s663 + $0x8] sm:$0xff]
        %667 = vset.pattern.permute.xlu0 0
        %668 = vperm.xlu0 %667, %v664
        %v669 = vpop.permute.xlu0 %668
        %672 = vset.pattern.permute.xlu0 0
        %673 = vperm.xlu0 %672, %v665
        %v674 = vpop.permute.xlu0 %673
        %v676 = vmul.f32 %v669, %v621
        %v677 = vmul.f32 %v669, %v622
        %v678 = vmul.f32 %v674, %v623
        %v679 = vmul.f32 %v674, %v624
        %v680 = vadd.f32 %v659, %v676
        %v681 = vadd.f32 %v660, %v677
        %v682 = vadd.f32 %v661, %v678
        %v683 = vadd.f32 %v662, %v679
        %684 = vrot.lane.b32.xlu0 %v593, 1
        %v685 = vpop.permute.xlu0 %684
        %686 = vrot.lane.b32.xlu0 %v595, 1
        %v687 = vpop.permute.xlu0 %686
        %688 = vrot.lane.b32.xlu0 %v594, 1
        %v689 = vpop.permute.xlu0 %688
        %690 = vrot.lane.b32.xlu0 %v596, 1
        %v691 = vpop.permute.xlu0 %690
        %vm692 = vcmp.lt.s32.totalorder %v576, 1
        %v693 = vsel %vm692, %v685, %v689
        %v694 = vsel %vm692, %v687, %v691
        %v695 = vsel %vm692, %v689, %v685
        %v696 = vsel %vm692, %v691, %v687
        %v698 = vlaneseq
        %v699 = vshrl.u32 %v698, 7
        %v700 = vsub.s32 0, %v699
        %v701 = vrot.slane %v257, %v700
        %v702 = vlaneseq
        %v703 = vshrl.u32 %v702, 7
        %v704 = vsub.s32 1, %v703
        %v705 = vrot.slane %v257, %v704
        %v708 = vmul.f32 %v695, %v701
        %v709 = vmul.f32 %v693, %v705
        %v710 = vmul.f32 %v696, %v701
        %v711 = vmul.f32 %v694, %v705
        %712 = vrot.lane.b32.xlu0 %v593, 127
        %v713 = vpop.permute.xlu0 %712
        %714 = vrot.lane.b32.xlu0 %v595, 127
        %v715 = vpop.permute.xlu0 %714
        %716 = vrot.lane.b32.xlu0 %v594, 127
        %v717 = vpop.permute.xlu0 %716
        %718 = vrot.lane.b32.xlu0 %v596, 127
        %v719 = vpop.permute.xlu0 %718
        %vm720 = vcmp.lt.s32.totalorder %v576, 127
        %v721 = vsel %vm720, %v713, %v717
        %v722 = vsel %vm720, %v715, %v719
        %v723 = vsel %vm720, %v717, %v713
        %v724 = vsel %vm720, %v719, %v715
        %v726 = vlaneseq
        %v727 = vshrl.u32 %v726, 7
        %v728 = vsub.s32 0, %v727
        %v729 = vrot.slane %v259, %v728
        %v730 = vlaneseq
        %v731 = vshrl.u32 %v730, 7
        %v732 = vsub.s32 1, %v731
        %v733 = vrot.slane %v259, %v732
        %v736 = vmul.f32 %v721, %v729
        %v737 = vmul.f32 %v723, %v733
        %v738 = vmul.f32 %v722, %v729
        %v739 = vmul.f32 %v724, %v733
        %v740 = vld [vmem:[%s4] sm:$0xff]
        %v741 = vld [vmem:[%s4 + $0x8] sm:$0xff]
        %743 = vset.pattern.permute.xlu0 0
        %744 = vperm.xlu0 %743, %v740
        %v745 = vpop.permute.xlu0 %744
        %748 = vset.pattern.permute.xlu0 0
        %749 = vperm.xlu0 %748, %v741
        %v750 = vpop.permute.xlu0 %749
        %v752 = vmul.f32 %v745, %v708
        %v753 = vmul.f32 %v745, %v709
        %v754 = vmul.f32 %v750, %v710
        %v755 = vmul.f32 %v750, %v711
        %v756 = vadd.f32 %v680, %v752
        %v757 = vadd.f32 %v681, %v753
        %v758 = vadd.f32 %v682, %v754
        %v759 = vadd.f32 %v683, %v755
        %s760 = scalar_lea.vmem %s4, 32
        %v761 = vld [vmem:[%s760] sm:$0xff]
        %v762 = vld [vmem:[%s760 + $0x8] sm:$0xff]
        %764 = vset.pattern.permute.xlu0 0
        %765 = vperm.xlu0 %764, %v761
        %v766 = vpop.permute.xlu0 %765
        %769 = vset.pattern.permute.xlu0 0
        %770 = vperm.xlu0 %769, %v762
        %v771 = vpop.permute.xlu0 %770
        %v773 = vmul.f32 %v766, %v736
        %v774 = vmul.f32 %v766, %v737
        %v775 = vmul.f32 %v771, %v738
        %v776 = vmul.f32 %v771, %v739
        %v777 = vadd.f32 %v756, %v773
        %v778 = vadd.f32 %v757, %v774
        %v779 = vadd.f32 %v758, %v775
        %v780 = vadd.f32 %v759, %v776
        %781 = vrot.lane.b32.xlu0 %v557, 1
        %v782 = vpop.permute.xlu0 %781
        %783 = vrot.lane.b32.xlu0 %v563, 1
        %v784 = vpop.permute.xlu0 %783
        %785 = vrot.lane.b32.xlu0 %v559, 1
        %v786 = vpop.permute.xlu0 %785
        %787 = vrot.lane.b32.xlu0 %v565, 1
        %v788 = vpop.permute.xlu0 %787
        %v789 = vsel %vm692, %v782, %v786
        %v790 = vsel %vm692, %v784, %v788
        %v791 = vsel %vm692, %v786, %v782
        %v792 = vsel %vm692, %v788, %v784
        %v793 = vmul.f32 %v791, %v701
        %v794 = vmul.f32 %v789, %v705
        %v795 = vmul.f32 %v792, %v701
        %v796 = vmul.f32 %v790, %v705
        %797 = vrot.lane.b32.xlu0 %v557, 127
        %v798 = vpop.permute.xlu0 %797
        %799 = vrot.lane.b32.xlu0 %v563, 127
        %v800 = vpop.permute.xlu0 %799
        %801 = vrot.lane.b32.xlu0 %v559, 127
        %v802 = vpop.permute.xlu0 %801
        %803 = vrot.lane.b32.xlu0 %v565, 127
        %v804 = vpop.permute.xlu0 %803
        %v805 = vsel %vm720, %v798, %v802
        %v806 = vsel %vm720, %v800, %v804
        %v807 = vsel %vm720, %v802, %v798
        %v808 = vsel %vm720, %v804, %v800
        %v809 = vmul.f32 %v805, %v729
        %v810 = vmul.f32 %v807, %v733
        %v811 = vmul.f32 %v806, %v729
        %v812 = vmul.f32 %v808, %v733
        %s813 = scalar_lea.vmem %s4, 48
        %v814 = vld [vmem:[%s813] sm:$0xff]
        %v815 = vld [vmem:[%s813 + $0x8] sm:$0xff]
        %817 = vset.pattern.permute.xlu0 0
        %818 = vperm.xlu0 %817, %v814
        %v819 = vpop.permute.xlu0 %818
        %822 = vset.pattern.permute.xlu0 0
        %823 = vperm.xlu0 %822, %v815
        %v824 = vpop.permute.xlu0 %823
        %v826 = vmul.f32 %v819, %v793
        %v827 = vmul.f32 %v819, %v794
        %v828 = vmul.f32 %v824, %v795
        %v829 = vmul.f32 %v824, %v796
        %v830 = vadd.f32 %v777, %v826
        %v831 = vadd.f32 %v778, %v827
        %v832 = vadd.f32 %v779, %v828
        %v833 = vadd.f32 %v780, %v829
        %s834 = scalar_lea.vmem %s4, 80
        %v835 = vld [vmem:[%s834] sm:$0xff]
        %v836 = vld [vmem:[%s834 + $0x8] sm:$0xff]
        %838 = vset.pattern.permute.xlu0 0
        %839 = vperm.xlu0 %838, %v835
        %v840 = vpop.permute.xlu0 %839
        %843 = vset.pattern.permute.xlu0 0
        %844 = vperm.xlu0 %843, %v836
        %v845 = vpop.permute.xlu0 %844
        %v847 = vmul.f32 %v840, %v809
        %v848 = vmul.f32 %v840, %v810
        %v849 = vmul.f32 %v845, %v811
        %v850 = vmul.f32 %v845, %v812
        %v851 = vadd.f32 %v830, %v847
        %v852 = vadd.f32 %v831, %v848
        %v853 = vadd.f32 %v832, %v849
        %v854 = vadd.f32 %v833, %v850
        %855 = vrot.lane.b32.xlu0 %v621, 1
        %v856 = vpop.permute.xlu0 %855
        %857 = vrot.lane.b32.xlu0 %v623, 1
        %v858 = vpop.permute.xlu0 %857
        %859 = vrot.lane.b32.xlu0 %v622, 1
        %v860 = vpop.permute.xlu0 %859
        %861 = vrot.lane.b32.xlu0 %v624, 1
        %v862 = vpop.permute.xlu0 %861
        %v863 = vsel %vm692, %v856, %v860
        %v864 = vsel %vm692, %v858, %v862
        %v865 = vsel %vm692, %v860, %v856
        %v866 = vsel %vm692, %v862, %v858
        %v867 = vmul.f32 %v865, %v701
        %v868 = vmul.f32 %v863, %v705
        %v869 = vmul.f32 %v866, %v701
        %v870 = vmul.f32 %v864, %v705
        %871 = vrot.lane.b32.xlu0 %v621, 127
        %v872 = vpop.permute.xlu0 %871
        %873 = vrot.lane.b32.xlu0 %v623, 127
        %v874 = vpop.permute.xlu0 %873
        %875 = vrot.lane.b32.xlu0 %v622, 127
        %v876 = vpop.permute.xlu0 %875
        %877 = vrot.lane.b32.xlu0 %v624, 127
        %v878 = vpop.permute.xlu0 %877
        %v879 = vsel %vm720, %v872, %v876
        %v880 = vsel %vm720, %v874, %v878
        %v881 = vsel %vm720, %v876, %v872
        %v882 = vsel %vm720, %v878, %v874
        %v883 = vmul.f32 %v879, %v729
        %v884 = vmul.f32 %v881, %v733
        %v885 = vmul.f32 %v880, %v729
        %v886 = vmul.f32 %v882, %v733
        %s887 = scalar_lea.vmem %s4, 96
        %v888 = vld [vmem:[%s887] sm:$0xff]
        %v889 = vld [vmem:[%s887 + $0x8] sm:$0xff]
        %891 = vset.pattern.permute.xlu0 0
        %892 = vperm.xlu0 %891, %v888
        %v893 = vpop.permute.xlu0 %892
        %896 = vset.pattern.permute.xlu0 0
        %897 = vperm.xlu0 %896, %v889
        %v898 = vpop.permute.xlu0 %897
        %v900 = vmul.f32 %v893, %v867
        %v901 = vmul.f32 %v893, %v868
        %v902 = vmul.f32 %v898, %v869
        %v903 = vmul.f32 %v898, %v870
        %v904 = vadd.f32 %v851, %v900
        %v905 = vadd.f32 %v852, %v901
        %v906 = vadd.f32 %v853, %v902
        %v907 = vadd.f32 %v854, %v903
        %s908 = scalar_lea.vmem %s4, 128
        %v909 = vld [vmem:[%s908] sm:$0xff]
        %v910 = vld [vmem:[%s908 + $0x8] sm:$0xff]
        %912 = vset.pattern.permute.xlu0 0
        %913 = vperm.xlu0 %912, %v909
        %v914 = vpop.permute.xlu0 %913
        %917 = vset.pattern.permute.xlu0 0
        %918 = vperm.xlu0 %917, %v910
        %v919 = vpop.permute.xlu0 %918
        %v921 = vmul.f32 %v914, %v883
        %v922 = vmul.f32 %v914, %v884
        %v923 = vmul.f32 %v919, %v885
        %v924 = vmul.f32 %v919, %v886
        %v925 = vadd.f32 %v904, %v921
        %v926 = vadd.f32 %v905, %v922
        %v927 = vadd.f32 %v906, %v923
        %v928 = vadd.f32 %v907, %v924
        %930 = vset.pattern.permute.xlu0 0
        %931 = vperm.xlu0 %930, %v271
        %v932 = vpop.permute.xlu0 %931
        %935 = vset.pattern.permute.xlu0 0
        %936 = vperm.xlu0 %935, %v272
        %v937 = vpop.permute.xlu0 %936
        %v939 = vadd.f32 %v925, %v932
        %v940 = vadd.f32 %v926, %v932
        %v941 = vadd.f32 %v927, %v937
        %v942 = vadd.f32 %v928, %v937
        %v943 = vmul.f32 %v939, %v941
        %v944 = vmul.f32 %v940, %v942
        %v945 = vadd.f32 %v943, %v944
        %946 = vadd.xlane.f32.xlu0 %v945
        %v947 = vpop.xlane.xlu0 %946
        %v948 = vrcp.pop 256.0
        %v949 = vmul.f32 %v947, %v948
        %v951 = vsel %vm282, %v262, 0
        %953 = vmatprep.subr.mxu0 0.0
        %954 = vmatpush1.msra.mxu0 0.0
        %955 = vmatprep.subr.mxu0 0.0
        %956 = vmatpush1.msra.mxu0 0.0
        %957 = vmatprep.subr.mxu0 0.0
        %958 = vmatpush1.msra.mxu0 0.0
        %959 = vmatprep.subr.mxu0 0.0
        %960 = vmatpush1.msra.mxu0 0.0
        %961 = vmatprep.subr.mxu0 0.0
        %962 = vmatpush1.msra.mxu0 0.0
        %963 = vmatprep.subr.mxu0 0.0
        %964 = vmatpush1.msra.mxu0 0.0
        %965 = vmatprep.subr.mxu0 0.0
        %966 = vmatpush1.msra.mxu0 0.0
        %967 = vmatprep.subr.mxu0 0.0
        %968 = vmatpush1.msra.mxu0 0.0
        %969 = vmatprep.subr.mxu0 0.0
        %970 = vmatpush1.msra.mxu0 0.0
        %971 = vmatprep.subr.mxu0 0.0
        %972 = vmatpush1.msra.mxu0 0.0
        %973 = vmatprep.subr.mxu0 0.0
        %974 = vmatpush1.msra.mxu0 0.0
        %975 = vmatprep.subr.mxu0 0.0
        %976 = vmatpush1.msra.mxu0 0.0
        %977 = vmatprep.subr.mxu0 0.0
        %978 = vmatpush1.msra.mxu0 0.0
        %979 = vmatprep.subr.mxu0 0.0
        %980 = vmatpush1.msra.mxu0 0.0
        %981 = vmatprep.subr.mxu0 0.0
        %982 = vmatpush1.msra.mxu0 0.0
        %983 = vmatprep.subr.mxu0 0.0
        %984 = vmatpush1.msra.mxu0 %v949
        %985 = vmatprep.subr.mxu0 0.0
        %986 = vmatpush2.msra.mxu0 0.0
        %987 = vmatprep.subr.mxu0 0.0
        %988 = vmatpush2.msra.mxu0 0.0
        %989 = vmatprep.subr.mxu0 0.0
        %990 = vmatpush2.msra.mxu0 0.0
        %991 = vmatprep.subr.mxu0 0.0
        %992 = vmatpush2.msra.mxu0 0.0
        %993 = vmatprep.subr.mxu0 0.0
        %994 = vmatpush2.msra.mxu0 0.0
        %995 = vmatprep.subr.mxu0 0.0
        %996 = vmatpush2.msra.mxu0 0.0
        %997 = vmatprep.subr.mxu0 0.0
        %998 = vmatpush2.msra.mxu0 0.0
        %999 = vmatprep.subr.mxu0 0.0
        %1000 = vmatpush2.msra.mxu0 0.0
        %1001 = vmatprep.subr.mxu0 0.0
        %1002 = vmatpush2.msra.mxu0 0.0
        %1003 = vmatprep.subr.mxu0 0.0
        %1004 = vmatpush2.msra.mxu0 0.0
        %1005 = vmatprep.subr.mxu0 0.0
        %1006 = vmatpush2.msra.mxu0 0.0
        %1007 = vmatprep.subr.mxu0 0.0
        %1008 = vmatpush2.msra.mxu0 0.0
        %1009 = vmatprep.subr.mxu0 0.0
        %1010 = vmatpush2.msra.mxu0 0.0
        %1011 = vmatprep.subr.mxu0 0.0
        %1012 = vmatpush2.msra.mxu0 0.0
        %1013 = vmatprep.subr.mxu0 0.0
        %1014 = vmatpush2.msra.mxu0 0.0
        %1015 = vmatprep.subr.mxu0 0.0
        %1016 = vmatpush2.msra.mxu0 0.0
        %1017 = vmatprep.mubr.f32.mxu0 0.0
        %1018 = vmatmul.mubr.f32.gmra.mxu0 %v951
        %v1019 = vpop.f32.mrf.mxu0
        %v1020 = vadd.f32 %v273, %v1019
        %v1021 = vpop.f32.mrf.mxu0
        %1022 = vdwg.mxu0
        %1024 = vset.pattern.permute.xlu0 0
        %1025 = vperm.xlu0 %1024, %v1020
        %v1026 = vpop.permute.xlu0 %1025
        %v1028 = vmul.f32 %v943, %v1026
        %v1029 = vmul.f32 %v944, %v1026
        %1031 = vset.pattern.permute.xlu0 0
        %1032 = vperm.xlu0 %1031, %v274
        %v1033 = vpop.permute.xlu0 %1032
        %v1036 = vsel %vm282, %v263, 0
        %1038 = vmatprep.subr.mxu0 0.0
        %1039 = vmatpush1.msra.mxu0 0.0
        %1040 = vmatprep.subr.mxu0 0.0
        %1041 = vmatpush1.msra.mxu0 0.0
        %1042 = vmatprep.subr.mxu0 0.0
        %1043 = vmatpush1.msra.mxu0 0.0
        %1044 = vmatprep.subr.mxu0 0.0
        %1045 = vmatpush1.msra.mxu0 0.0
        %1046 = vmatprep.subr.mxu0 0.0
        %1047 = vmatpush1.msra.mxu0 0.0
        %1048 = vmatprep.subr.mxu0 0.0
        %1049 = vmatpush1.msra.mxu0 0.0
        %1050 = vmatprep.subr.mxu0 0.0
        %1051 = vmatpush1.msra.mxu0 0.0
        %1052 = vmatprep.subr.mxu0 0.0
        %1053 = vmatpush1.msra.mxu0 0.0
        %1054 = vmatprep.subr.mxu0 0.0
        %1055 = vmatpush1.msra.mxu0 0.0
        %1056 = vmatprep.subr.mxu0 0.0
        %1057 = vmatpush1.msra.mxu0 0.0
        %1058 = vmatprep.subr.mxu0 0.0
        %1059 = vmatpush1.msra.mxu0 0.0
        %1060 = vmatprep.subr.mxu0 0.0
        %1061 = vmatpush1.msra.mxu0 0.0
        %1062 = vmatprep.subr.mxu0 0.0
        %1063 = vmatpush1.msra.mxu0 0.0
        %1064 = vmatprep.subr.mxu0 0.0
        %1065 = vmatpush1.msra.mxu0 0.0
        %1066 = vmatprep.subr.mxu0 0.0
        %1067 = vmatpush1.msra.mxu0 0.0
        %1068 = vmatprep.subr.mxu0 %v1029
        %1069 = vmatpush1.msra.mxu0 %v1028
        %1070 = vmatprep.subr.mxu0 0.0
        %1071 = vmatpush2.msra.mxu0 0.0
        %1072 = vmatprep.subr.mxu0 0.0
        %1073 = vmatpush2.msra.mxu0 0.0
        %1074 = vmatprep.subr.mxu0 0.0
        %1075 = vmatpush2.msra.mxu0 0.0
        %1076 = vmatprep.subr.mxu0 0.0
        %1077 = vmatpush2.msra.mxu0 0.0
        %1078 = vmatprep.subr.mxu0 0.0
        %1079 = vmatpush2.msra.mxu0 0.0
        %1080 = vmatprep.subr.mxu0 0.0
        %1081 = vmatpush2.msra.mxu0 0.0
        %1082 = vmatprep.subr.mxu0 0.0
        %1083 = vmatpush2.msra.mxu0 0.0
        %1084 = vmatprep.subr.mxu0 0.0
        %1085 = vmatpush2.msra.mxu0 0.0
        %1086 = vmatprep.subr.mxu0 0.0
        %1087 = vmatpush2.msra.mxu0 0.0
        %1088 = vmatprep.subr.mxu0 0.0
        %1089 = vmatpush2.msra.mxu0 0.0
        %1090 = vmatprep.subr.mxu0 0.0
        %1091 = vmatpush2.msra.mxu0 0.0
        %1092 = vmatprep.subr.mxu0 0.0
        %1093 = vmatpush2.msra.mxu0 0.0
        %1094 = vmatprep.subr.mxu0 0.0
        %1095 = vmatpush2.msra.mxu0 0.0
        %1096 = vmatprep.subr.mxu0 0.0
        %1097 = vmatpush2.msra.mxu0 0.0
        %1098 = vmatprep.subr.mxu0 0.0
        %1099 = vmatpush2.msra.mxu0 0.0
        %1100 = vmatprep.subr.mxu0 0.0
        %1101 = vmatpush2.msra.mxu0 0.0
        %1102 = vmatprep.mubr.f32.mxu0 0.0
        %1103 = vmatmul.mubr.f32.gmra.mxu0 %v1036
        %v1104 = vpop.f32.mrf.mxu0
        %v1105 = vadd.f32 %v1033, %v1104
        %v1106 = vpop.f32.mrf.mxu0
        %v1107 = vadd.f32 %v1033, %v1106
        %1108 = vdwg.mxu0
        %1110 = vset.pattern.permute.xlu0 0
        %1111 = vperm.xlu0 %1110, %v275
        %v1112 = vpop.permute.xlu0 %1111
        %v1114 = vmul.f32 %v1105, %v1112
        %v1115 = vmul.f32 %v1107, %v1112
        %v1116 = vadd.f32 %v250, %v1114
        %v1117 = vadd.f32 %v251, %v1115
        %1118 = vmatprep.subr.mxu0 0.0
        %1119 = vmatpush1.msra.mxu0 0.0
        %1120 = vmatprep.subr.mxu0 0.0
        %1121 = vmatpush1.msra.mxu0 0.0
        %1122 = vmatprep.subr.mxu0 0.0
        %1123 = vmatpush1.msra.mxu0 0.0
        %1124 = vmatprep.subr.mxu0 0.0
        %1125 = vmatpush1.msra.mxu0 0.0
        %1126 = vmatprep.subr.mxu0 0.0
        %1127 = vmatpush1.msra.mxu0 0.0
        %1128 = vmatprep.subr.mxu0 0.0
        %1129 = vmatpush1.msra.mxu0 0.0
        %1130 = vmatprep.subr.mxu0 0.0
        %1131 = vmatpush1.msra.mxu0 0.0
        %1132 = vmatprep.subr.mxu0 0.0
        %1133 = vmatpush1.msra.mxu0 0.0
        %1134 = vmatprep.subr.mxu0 0.0
        %1135 = vmatpush1.msra.mxu0 0.0
        %1136 = vmatprep.subr.mxu0 0.0
        %1137 = vmatpush1.msra.mxu0 0.0
        %1138 = vmatprep.subr.mxu0 0.0
        %1139 = vmatpush1.msra.mxu0 0.0
        %1140 = vmatprep.subr.mxu0 0.0
        %1141 = vmatpush1.msra.mxu0 0.0
        %1142 = vmatprep.subr.mxu0 0.0
        %1143 = vmatpush1.msra.mxu0 0.0
        %1144 = vmatprep.subr.mxu0 0.0
        %1145 = vmatpush1.msra.mxu0 0.0
        %1146 = vmatprep.subr.mxu0 0.0
        %1147 = vmatpush1.msra.mxu0 0.0
        %1148 = vmatprep.subr.mxu0 %v1117
        %1149 = vmatpush1.msra.mxu0 %v1116
        %1150 = vmatprep.subr.mxu0 0.0
        %1151 = vmatpush2.msra.mxu0 0.0
        %1152 = vmatprep.subr.mxu0 0.0
        %1153 = vmatpush2.msra.mxu0 0.0
        %1154 = vmatprep.subr.mxu0 0.0
        %1155 = vmatpush2.msra.mxu0 0.0
        %1156 = vmatprep.subr.mxu0 0.0
        %1157 = vmatpush2.msra.mxu0 0.0
        %1158 = vmatprep.subr.mxu0 0.0
        %1159 = vmatpush2.msra.mxu0 0.0
        %1160 = vmatprep.subr.mxu0 0.0
        %1161 = vmatpush2.msra.mxu0 0.0
        %1162 = vmatprep.subr.mxu0 0.0
        %1163 = vmatpush2.msra.mxu0 0.0
        %1164 = vmatprep.subr.mxu0 0.0
        %1165 = vmatpush2.msra.mxu0 0.0
        %1166 = vmatprep.subr.mxu0 0.0
        %1167 = vmatpush2.msra.mxu0 0.0
        %1168 = vmatprep.subr.mxu0 0.0
        %1169 = vmatpush2.msra.mxu0 0.0
        %1170 = vmatprep.subr.mxu0 0.0
        %1171 = vmatpush2.msra.mxu0 0.0
        %1172 = vmatprep.subr.mxu0 0.0
        %1173 = vmatpush2.msra.mxu0 0.0
        %1174 = vmatprep.subr.mxu0 0.0
        %1175 = vmatpush2.msra.mxu0 0.0
        %1176 = vmatprep.subr.mxu0 0.0
        %1177 = vmatpush2.msra.mxu0 0.0
        %1178 = vmatprep.subr.mxu0 0.0
        %1179 = vmatpush2.msra.mxu0 0.0
        %1180 = vmatprep.subr.mxu0 0.0
        %1181 = vmatpush2.msra.mxu0 0.0
        %1182 = vmatprep.mubr.f32.mxu0 0.0
        %1183 = vmatmul.mubr.f32.gmra.mxu0 %v284
        %v1184 = vpop.f32.mrf.mxu0
        %v1185 = vadd.f32 0.0, %v1184
        %v1186 = vpop.f32.mrf.mxu0
        %v1187 = vadd.f32 0.0, %v1186
        %1188 = vdwg.mxu0
        %v1189 = vmul.f32 %v1116, %v1116
        %v1190 = vmul.f32 %v1117, %v1117
        %1191 = vmatprep.subr.mxu0 0.0
        %1192 = vmatpush1.msra.mxu0 0.0
        %1193 = vmatprep.subr.mxu0 0.0
        %1194 = vmatpush1.msra.mxu0 0.0
        %1195 = vmatprep.subr.mxu0 0.0
        %1196 = vmatpush1.msra.mxu0 0.0
        %1197 = vmatprep.subr.mxu0 0.0
        %1198 = vmatpush1.msra.mxu0 0.0
        %1199 = vmatprep.subr.mxu0 0.0
        %1200 = vmatpush1.msra.mxu0 0.0
        %1201 = vmatprep.subr.mxu0 0.0
        %1202 = vmatpush1.msra.mxu0 0.0
        %1203 = vmatprep.subr.mxu0 0.0
        %1204 = vmatpush1.msra.mxu0 0.0
        %1205 = vmatprep.subr.mxu0 0.0
        %1206 = vmatpush1.msra.mxu0 0.0
        %1207 = vmatprep.subr.mxu0 0.0
        %1208 = vmatpush1.msra.mxu0 0.0
        %1209 = vmatprep.subr.mxu0 0.0
        %1210 = vmatpush1.msra.mxu0 0.0
        %1211 = vmatprep.subr.mxu0 0.0
        %1212 = vmatpush1.msra.mxu0 0.0
        %1213 = vmatprep.subr.mxu0 0.0
        %1214 = vmatpush1.msra.mxu0 0.0
        %1215 = vmatprep.subr.mxu0 0.0
        %1216 = vmatpush1.msra.mxu0 0.0
        %1217 = vmatprep.subr.mxu0 0.0
        %1218 = vmatpush1.msra.mxu0 0.0
        %1219 = vmatprep.subr.mxu0 0.0
        %1220 = vmatpush1.msra.mxu0 0.0
        %1221 = vmatprep.subr.mxu0 %v1190
        %1222 = vmatpush1.msra.mxu0 %v1189
        %1223 = vmatprep.subr.mxu0 0.0
        %1224 = vmatpush2.msra.mxu0 0.0
        %1225 = vmatprep.subr.mxu0 0.0
        %1226 = vmatpush2.msra.mxu0 0.0
        %1227 = vmatprep.subr.mxu0 0.0
        %1228 = vmatpush2.msra.mxu0 0.0
        %1229 = vmatprep.subr.mxu0 0.0
        %1230 = vmatpush2.msra.mxu0 0.0
        %1231 = vmatprep.subr.mxu0 0.0
        %1232 = vmatpush2.msra.mxu0 0.0
        %1233 = vmatprep.subr.mxu0 0.0
        %1234 = vmatpush2.msra.mxu0 0.0
        %1235 = vmatprep.subr.mxu0 0.0
        %1236 = vmatpush2.msra.mxu0 0.0
        %1237 = vmatprep.subr.mxu0 0.0
        %1238 = vmatpush2.msra.mxu0 0.0
        %1239 = vmatprep.subr.mxu0 0.0
        %1240 = vmatpush2.msra.mxu0 0.0
        %1241 = vmatprep.subr.mxu0 0.0
        %1242 = vmatpush2.msra.mxu0 0.0
        %1243 = vmatprep.subr.mxu0 0.0
        %1244 = vmatpush2.msra.mxu0 0.0
        %1245 = vmatprep.subr.mxu0 0.0
        %1246 = vmatpush2.msra.mxu0 0.0
        %1247 = vmatprep.subr.mxu0 0.0
        %1248 = vmatpush2.msra.mxu0 0.0
        %1249 = vmatprep.subr.mxu0 0.0
        %1250 = vmatpush2.msra.mxu0 0.0
        %1251 = vmatprep.subr.mxu0 0.0
        %1252 = vmatpush2.msra.mxu0 0.0
        %1253 = vmatprep.subr.mxu0 0.0
        %1254 = vmatpush2.msra.mxu0 0.0
        %1255 = vmatprep.mubr.f32.mxu0 0.0
        %1256 = vmatmul.mubr.f32.gmra.mxu0 %v284
        %v1257 = vpop.f32.mrf.mxu0
        %v1258 = vadd.f32 0.0, %v1257
        %v1259 = vpop.f32.mrf.mxu0
        %v1260 = vadd.f32 0.0, %v1259
        %1261 = vdwg.mxu0
        %v1262 = vmul.f32 %v1185, %v1185
        %v1263 = vmul.f32 %v1187, %v1187
        %v1264 = vsub.f32 %v1258, %v1262
        %v1265 = vsub.f32 %v1260, %v1263
        %v1266 = vmax.f32 %v1264, 0.0
        %v1267 = vmax.f32 %v1265, 0.0
        %v1268 = vlaneseq
        %v1269 = vshrl.u32 %v1268, 7
        %v1270 = vsub.s32 0, %v1269
        %v1271 = vrot.slane %v1185, %v1270
        %v1272 = vlaneseq
        %v1273 = vshrl.u32 %v1272, 7
        %v1274 = vsub.s32 0, %v1273
        %v1275 = vrot.slane %v1187, %v1274
        %v1276 = vsub.f32 %v1116, %v1271
        %v1277 = vsub.f32 %v1117, %v1275
        %v1278 = vadd.f32 %v1266, 1e-06
        %v1279 = vadd.f32 %v1267, 1e-06
        %v1280 = vrsqrt.pop %v1278
        %v1281 = vrsqrt.pop %v1279
        %v1282 = vlaneseq
        %v1283 = vshrl.u32 %v1282, 7
        %v1284 = vsub.s32 0, %v1283
        %v1285 = vrot.slane %v1280, %v1284
        %v1286 = vlaneseq
        %v1287 = vshrl.u32 %v1286, 7
        %v1288 = vsub.s32 0, %v1287
        %v1289 = vrot.slane %v1281, %v1288
        %v1290 = vmul.f32 %v1276, %v1285
        %v1291 = vmul.f32 %v1277, %v1289
        %1293 = vset.pattern.permute.xlu0 0
        %1294 = vperm.xlu0 %1293, %v276
        %v1295 = vpop.permute.xlu0 %1294
        %v1297 = vmul.f32 %v1295, %v1290
        %v1298 = vmul.f32 %v1295, %v1291
        %1300 = vset.pattern.permute.xlu0 0
        %1301 = vperm.xlu0 %1300, %v277
        %v1302 = vpop.permute.xlu0 %1301
        %v1304 = vadd.f32 %v1297, %v1302
        %v1305 = vadd.f32 %v1298, %v1302
        %1307 = vset.pattern.permute.xlu0 0
        %1308 = vperm.xlu0 %1307, %v278
        %v1309 = vpop.permute.xlu0 %1308
        %1312 = vset.pattern.permute.xlu0 0
        %1313 = vperm.xlu0 %1312, %v279
        %v1314 = vpop.permute.xlu0 %1313
        %v1317 = vsel %vm282, %v264, 0
        %v1320 = vsel %vm282, %v265, 0
        %1322 = vmatprep.subr.mxu0 0.0
        %1323 = vmatpush1.msra.mxu0 0.0
        %1324 = vmatprep.subr.mxu0 0.0
        %1325 = vmatpush1.msra.mxu0 0.0
        %1326 = vmatprep.subr.mxu0 0.0
        %1327 = vmatpush1.msra.mxu0 0.0
        %1328 = vmatprep.subr.mxu0 0.0
        %1329 = vmatpush1.msra.mxu0 0.0
        %1330 = vmatprep.subr.mxu0 0.0
        %1331 = vmatpush1.msra.mxu0 0.0
        %1332 = vmatprep.subr.mxu0 0.0
        %1333 = vmatpush1.msra.mxu0 0.0
        %1334 = vmatprep.subr.mxu0 0.0
        %1335 = vmatpush1.msra.mxu0 0.0
        %1336 = vmatprep.subr.mxu0 0.0
        %1337 = vmatpush1.msra.mxu0 0.0
        %1338 = vmatprep.subr.mxu0 0.0
        %1339 = vmatpush1.msra.mxu0 0.0
        %1340 = vmatprep.subr.mxu0 0.0
        %1341 = vmatpush1.msra.mxu0 0.0
        %1342 = vmatprep.subr.mxu0 0.0
        %1343 = vmatpush1.msra.mxu0 0.0
        %1344 = vmatprep.subr.mxu0 0.0
        %1345 = vmatpush1.msra.mxu0 0.0
        %1346 = vmatprep.subr.mxu0 0.0
        %1347 = vmatpush1.msra.mxu0 0.0
        %1348 = vmatprep.subr.mxu0 0.0
        %1349 = vmatpush1.msra.mxu0 0.0
        %1350 = vmatprep.subr.mxu0 0.0
        %1351 = vmatpush1.msra.mxu0 0.0
        %1352 = vmatprep.subr.mxu0 %v1305
        %1353 = vmatpush1.msra.mxu0 %v1304
        %1354 = vmatprep.subr.mxu0 0.0
        %1355 = vmatpush2.msra.mxu0 0.0
        %1356 = vmatprep.subr.mxu0 0.0
        %1357 = vmatpush2.msra.mxu0 0.0
        %1358 = vmatprep.subr.mxu0 0.0
        %1359 = vmatpush2.msra.mxu0 0.0
        %1360 = vmatprep.subr.mxu0 0.0
        %1361 = vmatpush2.msra.mxu0 0.0
        %1362 = vmatprep.subr.mxu0 0.0
        %1363 = vmatpush2.msra.mxu0 0.0
        %1364 = vmatprep.subr.mxu0 0.0
        %1365 = vmatpush2.msra.mxu0 0.0
        %1366 = vmatprep.subr.mxu0 0.0
        %1367 = vmatpush2.msra.mxu0 0.0
        %1368 = vmatprep.subr.mxu0 0.0
        %1369 = vmatpush2.msra.mxu0 0.0
        %1370 = vmatprep.subr.mxu0 0.0
        %1371 = vmatpush2.msra.mxu0 0.0
        %1372 = vmatprep.subr.mxu0 0.0
        %1373 = vmatpush2.msra.mxu0 0.0
        %1374 = vmatprep.subr.mxu0 0.0
        %1375 = vmatpush2.msra.mxu0 0.0
        %1376 = vmatprep.subr.mxu0 0.0
        %1377 = vmatpush2.msra.mxu0 0.0
        %1378 = vmatprep.subr.mxu0 0.0
        %1379 = vmatpush2.msra.mxu0 0.0
        %1380 = vmatprep.subr.mxu0 0.0
        %1381 = vmatpush2.msra.mxu0 0.0
        %1382 = vmatprep.subr.mxu0 0.0
        %1383 = vmatpush2.msra.mxu0 0.0
        %1384 = vmatprep.subr.mxu0 0.0
        %1385 = vmatpush2.msra.mxu0 0.0
        %1386 = vmatprep.mubr.f32.mxu0 0.0
        %1387 = vmatmul.mubr.f32.gmra.mxu0 %v1317
        %v1388 = vpop.f32.mrf.mxu0
        %v1389 = vadd.f32 %v1309, %v1388
        %v1390 = vpop.f32.mrf.mxu0
        %v1391 = vadd.f32 %v1309, %v1390
        %1392 = vmatprep.mubr.f32.mxu0 0.0
        %1393 = vmatmul.mubr.f32.gmra.mxu0 %v1320
        %v1394 = vpop.f32.mrf.mxu0
        %v1395 = vadd.f32 %v1314, %v1394
        %v1396 = vpop.f32.mrf.mxu0
        %v1397 = vadd.f32 %v1314, %v1396
        %1398 = vdwg.mxu0
        %v1399 = vmul.f32 %v1389, %v1395
        %v1400 = vmul.f32 %v1391, %v1397
        %1402 = vset.pattern.permute.xlu0 0
        %1403 = vperm.xlu0 %1402, %v280
        %v1404 = vpop.permute.xlu0 %1403
        %v1407 = vsel %vm282, %v266, 0
        %1409 = vmatprep.subr.mxu0 0.0
        %1410 = vmatpush1.msra.mxu0 0.0
        %1411 = vmatprep.subr.mxu0 0.0
        %1412 = vmatpush1.msra.mxu0 0.0
        %1413 = vmatprep.subr.mxu0 0.0
        %1414 = vmatpush1.msra.mxu0 0.0
        %1415 = vmatprep.subr.mxu0 0.0
        %1416 = vmatpush1.msra.mxu0 0.0
        %1417 = vmatprep.subr.mxu0 0.0
        %1418 = vmatpush1.msra.mxu0 0.0
        %1419 = vmatprep.subr.mxu0 0.0
        %1420 = vmatpush1.msra.mxu0 0.0
        %1421 = vmatprep.subr.mxu0 0.0
        %1422 = vmatpush1.msra.mxu0 0.0
        %1423 = vmatprep.subr.mxu0 0.0
        %1424 = vmatpush1.msra.mxu0 0.0
        %1425 = vmatprep.subr.mxu0 0.0
        %1426 = vmatpush1.msra.mxu0 0.0
        %1427 = vmatprep.subr.mxu0 0.0
        %1428 = vmatpush1.msra.mxu0 0.0
        %1429 = vmatprep.subr.mxu0 0.0
        %1430 = vmatpush1.msra.mxu0 0.0
        %1431 = vmatprep.subr.mxu0 0.0
        %1432 = vmatpush1.msra.mxu0 0.0
        %1433 = vmatprep.subr.mxu0 0.0
        %1434 = vmatpush1.msra.mxu0 0.0
        %1435 = vmatprep.subr.mxu0 0.0
        %1436 = vmatpush1.msra.mxu0 0.0
        %1437 = vmatprep.subr.mxu0 0.0
        %1438 = vmatpush1.msra.mxu0 0.0
        %1439 = vmatprep.subr.mxu0 %v1400
        %1440 = vmatpush1.msra.mxu0 %v1399
        %1441 = vmatprep.subr.mxu0 0.0
        %1442 = vmatpush2.msra.mxu0 0.0
        %1443 = vmatprep.subr.mxu0 0.0
        %1444 = vmatpush2.msra.mxu0 0.0
        %1445 = vmatprep.subr.mxu0 0.0
        %1446 = vmatpush2.msra.mxu0 0.0
        %1447 = vmatprep.subr.mxu0 0.0
        %1448 = vmatpush2.msra.mxu0 0.0
        %1449 = vmatprep.subr.mxu0 0.0
        %1450 = vmatpush2.msra.mxu0 0.0
        %1451 = vmatprep.subr.mxu0 0.0
        %1452 = vmatpush2.msra.mxu0 0.0
        %1453 = vmatprep.subr.mxu0 0.0
        %1454 = vmatpush2.msra.mxu0 0.0
        %1455 = vmatprep.subr.mxu0 0.0
        %1456 = vmatpush2.msra.mxu0 0.0
        %1457 = vmatprep.subr.mxu0 0.0
        %1458 = vmatpush2.msra.mxu0 0.0
        %1459 = vmatprep.subr.mxu0 0.0
        %1460 = vmatpush2.msra.mxu0 0.0
        %1461 = vmatprep.subr.mxu0 0.0
        %1462 = vmatpush2.msra.mxu0 0.0
        %1463 = vmatprep.subr.mxu0 0.0
        %1464 = vmatpush2.msra.mxu0 0.0
        %1465 = vmatprep.subr.mxu0 0.0
        %1466 = vmatpush2.msra.mxu0 0.0
        %1467 = vmatprep.subr.mxu0 0.0
        %1468 = vmatpush2.msra.mxu0 0.0
        %1469 = vmatprep.subr.mxu0 0.0
        %1470 = vmatpush2.msra.mxu0 0.0
        %1471 = vmatprep.subr.mxu0 0.0
        %1472 = vmatpush2.msra.mxu0 0.0
        %1473 = vmatprep.mubr.f32.mxu0 0.0
        %1474 = vmatmul.mubr.f32.gmra.mxu0 %v1407
        %v1475 = vpop.f32.mrf.mxu0
        %v1476 = vadd.f32 %v1404, %v1475
        %v1477 = vpop.f32.mrf.mxu0
        %v1478 = vadd.f32 %v1404, %v1477
        %1479 = vdwg.mxu0
        %1481 = vset.pattern.permute.xlu0 0
        %1482 = vperm.xlu0 %1481, %v281
        %v1483 = vpop.permute.xlu0 %1482
        %v1485 = vmul.f32 %v1476, %v1483
        %v1486 = vmul.f32 %v1478, %v1483
        %v1487 = vadd.f32 %v1116, %v1485
        %v1488 = vadd.f32 %v1117, %v1486
        %1489 = vst [vmem:[%s244] sm:$0xff] %v1487
        %1490 = vst [vmem:[%s244 + $0x8] sm:$0xff] %v1488
        %s1491 = sand.u32 %s159, 1
        %s1492 = scalar_lea.sflag [#allocation3], %s1491
        %s1493 = sand.u32 %s159, 1
        %s1494 = smul.addr %s1493, 16
        %s1495 = scalar_lea.vmem [#allocation2], %s1494
        // Predicated region
        $region45: #{tpu_custom_call.1} parent=43 // pred_check
          %p1496 = pneg %p169
        $region46: #{tpu_custom_call.1} parent=43 // pred_check_branch
          %1498 = sbr.rel (%p1496) target = $region48
        $region47: #{tpu_custom_call.1} parent=43 // pred_region
          %s1500 = ssub.s32 256, 256
          %1501 = vsyncadd %s1492, %s1500
          %s1502 = smul.addr %s20, 2
          %s1503 = smul.addr %s1502, 128
          %s1504 = scalar_lea.hbm %s6, %s1503
          %s1506 = sshll.u32 %s1495, 4
          %s1507 = int_to_ptr.vmem [resolvable:$true] %s1506
          %1509 = dma.vmem_to_hbm [thread:$0]  %s1507, 256, %s1504, %s1492
        $region48: #{tpu_custom_call.1} parent=43 // pred_fallthru
          _
      $region44: #{tpu_custom_call.1} parent=5 // pred_fallthru
        _
      %p1510 = scmp.le.s32.totalorder 2, %s15
      // Predicated region
      $region49: #{tpu_custom_call.1} parent=5 // pred_check
        %p1511 = pneg %p1510
      $region50: #{tpu_custom_call.1} parent=5 // pred_check_branch
        %1513 = sbr.rel (%p1511) target = $region52
      $region51: #{tpu_custom_call.1} parent=5 // pred_region
        %s1514 = ssub.s32 %s15, 2
        // Predicated region
        $region53: #{tpu_custom_call.1} parent=51 // pred_check
          %p1515 = pneg %p175
        $region54: #{tpu_custom_call.1} parent=51 // pred_check_branch
          %1517 = sbr.rel (%p1515) target = $region56
        $region55: #{tpu_custom_call.1} parent=51 // pred_region
          %s1518 = sand.u32 %s160, 1
          %s1519 = scalar_lea.sflag [#allocation3], %s1518
          %s1520 = sand.u32 %s160, 1
          %s1521 = smul.addr %s1520, 16
          %s1522 = scalar_lea.vmem [#allocation2], %s1521
          %1523 = dma.done %s1519, 256
        $region56: #{tpu_custom_call.1} parent=51 // pred_fallthru
          _
      $region52: #{tpu_custom_call.1} parent=5 // pred_fallthru
        _
    $region6: #{tpu_custom_call.1} parent=1 // loop_footer
      %s19 = sadd.s32 1, %s15
    $region7: #{tpu_custom_call.1} parent=1 // loop_footer_branch
      %14 = sbr.rel target = $region3
    $region8: #{tpu_custom_call.1} parent=1 // loop_exit
      _
    %1524 = vsyncpa [#allocation3], 1
    %s1525 = scalar_lea.sflag [#allocation3], 1
    %1526 = vsyncpa %s1525, 1

</llo_original>
